<compile_context>
chip_gen: v7x
topology: tpu7x:2x2x1
jax: 0.10.0
libtpu: 0.0.40
codegen_flags: <defaults>
</compile_context>

<pallas_src>
import functools

import jax
import jax.numpy as jnp
from jax.experimental import pallas as pl
from jax.experimental.pallas import tpu as pltpu


def _round_up(x, m):
    return (x + m - 1) // m * m


def _pad2d(a, rows, cols):
    r, c = a.shape
    if r == rows and c == cols:
        return a
    return jnp.pad(a, ((0, rows - r), (0, cols - c)))


def _fc_vi_lr_kernel(x_ref, xsq_ref, wm_ref, wv_ref, bm_ref, bv_ref, eps_ref,
                     out_ref, mu_acc, var_acc, *, relu):
    """One (bm, bn) output tile; partial products accumulated over the K grid axis."""
    k = pl.program_id(2)

    @pl.when(k == 0)
    def _():
        mu_acc[...] = jnp.zeros_like(mu_acc)
        var_acc[...] = jnp.zeros_like(var_acc)

    # Both matmuls feed the MXU with bf16 inputs and accumulate in f32 scratch.
    mu_acc[...] += jnp.dot(x_ref[...], wm_ref[...], preferred_element_type=jnp.float32)
    var_acc[...] += jnp.dot(xsq_ref[...], wv_ref[...], preferred_element_type=jnp.float32)

    @pl.when(k == pl.num_programs(2) - 1)
    def _():
        ind_mu = mu_acc[...] + bm_ref[...]             # f32
        ind_var = var_acc[...] + bv_ref[...]           # f32, >= 0 (padded cols contribute 0)
        s = eps_ref[...].astype(jnp.float32) * jnp.sqrt(ind_var) + ind_mu
        if relu:
            s = jnp.maximum(s, 0.0)
        out_ref[...] = s.astype(out_ref.dtype)


def fc_vi_lr_forward(x, w_mean, w_logvar, b_mean, b_logvar, eps, relu, *,
                     block_m=512, block_n=1024, block_k=1024):
    """One FC_VI_LR layer: sampled pre-activation (+ optional relu)."""
    B, indim = x.shape
    outdim = w_mean.shape[1]

    # Hoist exp() and all dtype casts out of the kernel; cast BEFORE padding so the padded
    # copies (if any) are half-width.
    xf = x.astype(jnp.float32)
    x_b = x.astype(jnp.bfloat16)
    xsq_b = (xf * xf).astype(jnp.bfloat16)        # square once per layer (not per (j, k) tile)
    wm_b = w_mean.astype(jnp.bfloat16)
    wv_b = jnp.exp(w_logvar.astype(jnp.float32)).astype(jnp.bfloat16)
    bm_f = b_mean.astype(jnp.float32).reshape(1, outdim)
    bv_f = jnp.exp(b_logvar.astype(jnp.float32)).reshape(1, outdim)
    eps_b = eps.astype(jnp.bfloat16)
    # TODO(synk): generate eps in-kernel (pltpu.prng_seed + stateful_normal) to remove the
    #             eps HBM stream entirely; needs the exact-reference check replaced by a
    #             moment/statistical test.

    # Tile sizes: bm >= B where possible (weight tiles streamed from HBM exactly once),
    # lane dims multiples of 128, large K tile to cut accumulator RMW traffic per output tile.
    bm = min(block_m, _round_up(B, 8))
    bn = min(block_n, _round_up(outdim, 128))
    bk = min(block_k, _round_up(indim, 128))
    Mp, Np, Kp = _round_up(B, bm), _round_up(outdim, bn), _round_up(indim, bk)

    # v7x megacore: if the parallel (i, j) grid collapsed to a single block, split N into two
    # lane-aligned (multiple-of-256) blocks so both TensorCores get work; cheap on v5e/v6e.
    if (Mp // bm) * (Np // bn) == 1 and Np >= 256 and Np % 256 == 0:
        bn = Np // 2

    x_p = _pad2d(x_b, Mp, Kp)
    xsq_p = _pad2d(xsq_b, Mp, Kp)
    wm_p = _pad2d(wm_b, Kp, Np)
    wv_p = _pad2d(wv_b, Kp, Np)
    bm_p = _pad2d(bm_f, 1, Np)
    bv_p = _pad2d(bv_f, 1, Np)
    eps_p = _pad2d(eps_b, Mp, Np)

    # Hidden (relu) layers emit bf16: halves writeback and the next layer's x read.
    out_dtype = jnp.bfloat16 if relu else jnp.float32
    out_isize = 2 if relu else 4

    # VMEM budget derived from the actual tiles (double-buffered inputs/output + f32 scratch),
    # clamped to v7x's 64 MiB physical VMEM and never below the default scoped limit.
    vmem_est = (2 * (2 * bm * bk * 2 + 2 * bk * bn * 2 + bm * bn * 2 + 2 * bn * 4)
                + 2 * bm * bn * out_isize
                + 2 * bm * bn * 4)
    vmem_limit = min(max(int(1.5 * vmem_est) + (4 << 20), 32 << 20), 64 << 20)

    kernel = functools.partial(_fc_vi_lr_kernel, relu=relu)
    out = pl.pallas_call(
        kernel,
        out_shape=jax.ShapeDtypeStruct((Mp, Np), out_dtype),
        grid_spec=pltpu.PrefetchScalarGridSpec(
            num_scalar_prefetch=0,
            grid=(Mp // bm, Np // bn, Kp // bk),
            in_specs=[
                pl.BlockSpec((bm, bk), lambda i, j, k: (i, k)),   # x tile           (bf16)
                pl.BlockSpec((bm, bk), lambda i, j, k: (i, k)),   # x**2 tile        (bf16)
                pl.BlockSpec((bk, bn), lambda i, j, k: (k, j)),   # w_mean tile      (bf16)
                pl.BlockSpec((bk, bn), lambda i, j, k: (k, j)),   # exp(w_logvar)    (bf16)
                pl.BlockSpec((1, bn), lambda i, j, k: (0, j)),    # b_mean           (f32)
                pl.BlockSpec((1, bn), lambda i, j, k: (0, j)),    # exp(b_logvar)    (f32)
                pl.BlockSpec((bm, bn), lambda i, j, k: (i, j)),   # eps tile         (bf16)
            ],
            out_specs=pl.BlockSpec((bm, bn), lambda i, j, k: (i, j)),
            scratch_shapes=[
                pltpu.VMEM((bm, bn), jnp.float32),  # ind_mu accumulator
                pltpu.VMEM((bm, bn), jnp.float32),  # ind_var accumulator
            ],
        ),
        compiler_params=pltpu.CompilerParams(
            dimension_semantics=("parallel", "parallel", "arbitrary"),
            vmem_limit_bytes=vmem_limit,
        ),
    )(x_p, xsq_p, wm_p, wv_p, bm_p, bv_p, eps_p)
    return out[:B, :outdim]


class BNN_VILR:
    """JAX/Pallas port of the PyTorch BNN_VILR (forward pass only)."""

    def __init__(self, dim_layer, number_layers, in_dim, out_dim,
                 prior_mean, prior_var, batch, dataset_size, key):
        self.N = dataset_size
        self.prior_mean = jnp.float32(prior_mean)
        self.prior_logvar = jnp.log(jnp.float32(prior_var))

        if number_layers == 0:
            layer_dims = [(in_dim, out_dim)]
            self.relu_flags = [False]
        else:
            layer_dims = [(in_dim, dim_layer)]
            self.relu_flags = [True]
            for _ in range(number_layers - 1):
                layer_dims.append((dim_layer, dim_layer))
                self.relu_flags.append(True)
            layer_dims.append((dim_layer, out_dim))
            self.relu_flags.append(False)

        # Deterministic parameter init (analogue of torch.randn in FC_VI_LR.__init__).
        self.params = []
        for (din, dout) in layer_dims:
            key, k1, k2, k3, k4 = jax.random.split(key, 5)
            self.params.append({
                "w_mean": jax.random.normal(k1, (din, dout), jnp.float32),
                "w_logvar": jax.random.normal(k2, (din, dout), jnp.float32),
                "b_mean": jax.random.normal(k3, (dout,), jnp.float32),
                "b_logvar": jax.random.normal(k4, (dout,), jnp.float32),
            })

        self._forward_jit = jax.jit(self._forward_impl)

    def _forward_impl(self, params, x, key):
        # eps plays the role of self.sampler.normal_() (fresh N(0,1) each layer/call).
        # TODO(synk): fuse all layers into a single pallas_call for tiny models, keeping
        #             activations resident in VMEM between layers.
        for p, relu in zip(params, self.relu_flags):
            key, sub = jax.random.split(key)
            eps = jax.random.normal(sub, (x.shape[0], p["w_mean"].shape[1]), jnp.float32)
            x = fc_vi_lr_forward(
                x, p["w_mean"], p["w_logvar"], p["b_mean"], p["b_logvar"], eps, relu
            )
        return x

    def forward(self, x, key):
        return self._forward_jit(self.params, x, key)


def _reference_forward(model, x, key):
    """Pure-JAX reference mirroring the kernel's bf16-MXU / f32-accumulate numerics."""
    for p, relu in zip(model.params, model.relu_flags):
        key, sub = jax.random.split(key)
        eps = jax.random.normal(sub, (x.shape[0], p["w_mean"].shape[1]), jnp.float32)
        eps = eps.astype(jnp.bfloat16).astype(jnp.float32)
        xf = x.astype(jnp.float32)
        xb = x.astype(jnp.bfloat16)
        xsq = (xf * xf).astype(jnp.bfloat16)
        wm = p["w_mean"].astype(jnp.bfloat16)
        wv = jnp.exp(p["w_logvar"]).astype(jnp.bfloat16)
        mu = jnp.dot(xb, wm, preferred_element_type=jnp.float32) + p["b_mean"]
        var = jnp.dot(xsq, wv, preferred_element_type=jnp.float32) + jnp.exp(p["b_logvar"])
        s = eps * jnp.sqrt(var) + mu
        s = jnp.maximum(s, 0.0) if relu else s
        x = s.astype(jnp.bfloat16) if relu else s   # hidden layers carried in bf16, like kernel
    return x


if __name__ == "__main__":
    # Small shapes implied by the forward: x is (batch, in_dim) 2D features.
    batch, in_dim, dim_layer, out_dim = 64, 32, 64, 16
    number_layers = 2
    prior_mean, prior_var = 0.0, 1.0
    dataset_size = 100

    root = jax.random.PRNGKey(0)
    k_params, k_x, k_eps = jax.random.split(root, 3)

    model = BNN_VILR(dim_layer, number_layers, in_dim, out_dim,
                     prior_mean, prior_var, batch, dataset_size, k_params)

    x = jax.random.normal(k_x, (batch, in_dim), jnp.float32)

    out = model.forward(x, k_eps)
    out = jax.block_until_ready(out)

    ref = _reference_forward(model, x, k_eps)
    assert out.shape == (batch, out_dim)
    assert out.dtype == jnp.float32
    assert jnp.allclose(out, ref, atol=2e-2, rtol=2e-2), "Pallas output mismatch vs JAX reference"

    print("KERNEL_OK")
</pallas_src>

<mosaic_0001>
module attributes {stable_mosaic.version = 11 : i64} {
  func.func @_fc_vi_lr_kernel(%arg0: i32, %arg1: i32, %arg2: i32, %arg3: memref<64x128xbf16, #tpu.memory_space<vmem>>, %arg4: memref<64x128xbf16, #tpu.memory_space<vmem>>, %arg5: memref<128x128xbf16, #tpu.memory_space<vmem>>, %arg6: memref<128x128xbf16, #tpu.memory_space<vmem>>, %arg7: memref<1x128xf32, #tpu.memory_space<vmem>>, %arg8: memref<1x128xf32, #tpu.memory_space<vmem>>, %arg9: memref<64x128xbf16, #tpu.memory_space<vmem>>, %arg10: memref<64x128xbf16, #tpu.memory_space<vmem>>, %arg11: memref<64x128xf32, #tpu.memory_space<vmem>>, %arg12: memref<64x128xf32, #tpu.memory_space<vmem>>) attributes {dimension_semantics = [#tpu.dimension_semantics<parallel>, #tpu.dimension_semantics<parallel>, #tpu.dimension_semantics<arbitrary>], iteration_bounds = array<i64: 1, 1, 1>, scalar_prefetch = 0 : i64, scratch_operands = 2 : i64, tpu.core_type = #tpu.core_type<tc>, window_params = [{transform_indices = @transform_0, window_bounds = array<i64: 64, 128>}, {transform_indices = @transform_1, window_bounds = array<i64: 64, 128>}, {transform_indices = @transform_2, window_bounds = array<i64: 128, 128>}, {transform_indices = @transform_3, window_bounds = array<i64: 128, 128>}, {transform_indices = @transform_4, window_bounds = array<i64: 1, 128>}, {transform_indices = @transform_5, window_bounds = array<i64: 1, 128>}, {transform_indices = @transform_6, window_bounds = array<i64: 64, 128>}, {transform_indices = @transform_7, window_bounds = array<i64: 64, 128>}]} {
    %c0_i32 = arith.constant 0 : i32
    %0 = arith.cmpi eq, %arg2, %c0_i32 : i32
    %1 = arith.extui %0 : i1 to i32
    %c0_i32_0 = arith.constant 0 : i32
    %2 = arith.cmpi ne, %1, %c0_i32_0 : i32
    scf.if %2 {
      %cst_19 = arith.constant 0.000000e+00 : f32
      %18 = vector.broadcast %cst_19 : f32 to vector<64x128xf32>
      %c0_20 = arith.constant 0 : index
      %c0_21 = arith.constant 0 : index
      %19 = vector.load %arg11[%c0_20, %c0_21] : memref<64x128xf32, #tpu.memory_space<vmem>>, vector<64x128xf32>
      tpu.vector_store %arg11[%c0_20, %c0_21], %18 {strides = array<i32>} : memref<64x128xf32, #tpu.memory_space<vmem>>, vector<64x128xf32>,
      %cst_22 = arith.constant 0.000000e+00 : f32
      %20 = vector.broadcast %cst_22 : f32 to vector<64x128xf32>
      %c0_23 = arith.constant 0 : index
      %c0_24 = arith.constant 0 : index
      %21 = vector.load %arg12[%c0_23, %c0_24] : memref<64x128xf32, #tpu.memory_space<vmem>>, vector<64x128xf32>
      tpu.vector_store %arg12[%c0_23, %c0_24], %20 {strides = array<i32>} : memref<64x128xf32, #tpu.memory_space<vmem>>, vector<64x128xf32>,
    } else {
    }
    %c0 = arith.constant 0 : index
    %c0_1 = arith.constant 0 : index
    %3 = vector.load %arg11[%c0, %c0_1] : memref<64x128xf32, #tpu.memory_space<vmem>>, vector<64x128xf32>
    %c0_2 = arith.constant 0 : index
    %c0_3 = arith.constant 0 : index
    %4 = vector.load %arg3[%c0_2, %c0_3] : memref<64x128xbf16, #tpu.memory_space<vmem>>, vector<64x128xbf16>
    %c0_4 = arith.constant 0 : index
    %c0_5 = arith.constant 0 : index
    %5 = vector.load %arg5[%c0_4, %c0_5] : memref<128x128xbf16, #tpu.memory_space<vmem>>, vector<128x128xbf16>
    %cst = arith.constant dense<0.000000e+00> : vector<64x128xf32>
    %6 = tpu.matmul %4, %5, %cst {dimension_numbers = #tpu.dot_dimension_numbers<[1], [0], [0], [1], [0, 0, 1, 1], [], []>} : vector<64x128xbf16>, vector<128x128xbf16>, vector<64x128xf32> -> vector<64x128xf32>
    %7 = arith.addf %3, %6 : vector<64x128xf32>
    %c0_6 = arith.constant 0 : index
    %c0_7 = arith.constant 0 : index
    %8 = vector.load %arg11[%c0_6, %c0_7] : memref<64x128xf32, #tpu.memory_space<vmem>>, vector<64x128xf32>
    tpu.vector_store %arg11[%c0_6, %c0_7], %7 {strides = array<i32>} : memref<64x128xf32, #tpu.memory_space<vmem>>, vector<64x128xf32>,
    %c0_8 = arith.constant 0 : index
    %c0_9 = arith.constant 0 : index
    %9 = vector.load %arg12[%c0_8, %c0_9] : memref<64x128xf32, #tpu.memory_space<vmem>>, vector<64x128xf32>
    %c0_10 = arith.constant 0 : index
    %c0_11 = arith.constant 0 : index
    %10 = vector.load %arg4[%c0_10, %c0_11] : memref<64x128xbf16, #tpu.memory_space<vmem>>, vector<64x128xbf16>
    %c0_12 = arith.constant 0 : index
    %c0_13 = arith.constant 0 : index
    %11 = vector.load %arg6[%c0_12, %c0_13] : memref<128x128xbf16, #tpu.memory_space<vmem>>, vector<128x128xbf16>
    %cst_14 = arith.constant dense<0.000000e+00> : vector<64x128xf32>
    %12 = tpu.matmul %10, %11, %cst_14 {dimension_numbers = #tpu.dot_dimension_numbers<[1], [0], [0], [1], [0, 0, 1, 1], [], []>} : vector<64x128xbf16>, vector<128x128xbf16>, vector<64x128xf32> -> vector<64x128xf32>
    %13 = arith.addf %9, %12 : vector<64x128xf32>
    %c0_15 = arith.constant 0 : index
    %c0_16 = arith.constant 0 : index
    %14 = vector.load %arg12[%c0_15, %c0_16] : memref<64x128xf32, #tpu.memory_space<vmem>>, vector<64x128xf32>
    tpu.vector_store %arg12[%c0_15, %c0_16], %13 {strides = array<i32>} : memref<64x128xf32, #tpu.memory_space<vmem>>, vector<64x128xf32>,
    %c0_i32_17 = arith.constant 0 : i32
    %15 = arith.cmpi eq, %arg2, %c0_i32_17 : i32
    %16 = arith.extui %15 : i1 to i32
    %c0_i32_18 = arith.constant 0 : i32
    %17 = arith.cmpi ne, %16, %c0_i32_18 : i32
    scf.if %17 {
      %c0_19 = arith.constant 0 : index
      %c0_20 = arith.constant 0 : index
      %18 = vector.load %arg11[%c0_19, %c0_20] : memref<64x128xf32, #tpu.memory_space<vmem>>, vector<64x128xf32>
      %c0_21 = arith.constant 0 : index
      %c0_22 = arith.constant 0 : index
      %19 = vector.load %arg7[%c0_21, %c0_22] : memref<1x128xf32, #tpu.memory_space<vmem>>, vector<1x128xf32>
      %20 = vector.broadcast %19 : vector<1x128xf32> to vector<64x128xf32>
      %21 = arith.addf %18, %20 : vector<64x128xf32>
      %c0_23 = arith.constant 0 : index
      %c0_24 = arith.constant 0 : index
      %22 = vector.load %arg12[%c0_23, %c0_24] : memref<64x128xf32, #tpu.memory_space<vmem>>, vector<64x128xf32>
      %c0_25 = arith.constant 0 : index
      %c0_26 = arith.constant 0 : index
      %23 = vector.load %arg8[%c0_25, %c0_26] : memref<1x128xf32, #tpu.memory_space<vmem>>, vector<1x128xf32>
      %24 = vector.broadcast %23 : vector<1x128xf32> to vector<64x128xf32>
      %25 = arith.addf %22, %24 : vector<64x128xf32>
      %c0_27 = arith.constant 0 : index
      %c0_28 = arith.constant 0 : index
      %26 = vector.load %arg9[%c0_27, %c0_28] : memref<64x128xbf16, #tpu.memory_space<vmem>>, vector<64x128xbf16>
      %27 = arith.extf %26 : vector<64x128xbf16> to vector<64x128xf32>
      %28 = math.sqrt %25 : vector<64x128xf32>
      %29 = arith.mulf %27, %28 : vector<64x128xf32>
      %30 = arith.addf %29, %21 : vector<64x128xf32>
      %cst_29 = arith.constant 0.000000e+00 : f32
      %31 = vector.broadcast %cst_29 : f32 to vector<64x128xf32>
      %32 = arith.maximumf %30, %31 : vector<64x128xf32>
      %33 = arith.truncf %32 : vector<64x128xf32> to vector<64x128xbf16>
      %c0_30 = arith.constant 0 : index
      %c0_31 = arith.constant 0 : index
      %34 = vector.load %arg10[%c0_30, %c0_31] : memref<64x128xbf16, #tpu.memory_space<vmem>>, vector<64x128xbf16>
      tpu.vector_store %arg10[%c0_30, %c0_31], %33 {strides = array<i32>} : memref<64x128xbf16, #tpu.memory_space<vmem>>, vector<64x128xbf16>,
    } else {
    }
    return
  }
  func.func @transform_0(%arg0: i32, %arg1: i32, %arg2: i32) -> (i32, i32) {
    %c0_i32 = arith.constant 0 : i32
    return %arg0, %arg2 : i32, i32
  }
  func.func @transform_1(%arg0: i32, %arg1: i32, %arg2: i32) -> (i32, i32) {
    %c0_i32 = arith.constant 0 : i32
    return %arg0, %arg2 : i32, i32
  }
  func.func @transform_2(%arg0: i32, %arg1: i32, %arg2: i32) -> (i32, i32) {
    %c0_i32 = arith.constant 0 : i32
    return %arg2, %arg1 : i32, i32
  }
  func.func @transform_3(%arg0: i32, %arg1: i32, %arg2: i32) -> (i32, i32) {
    %c0_i32 = arith.constant 0 : i32
    return %arg2, %arg1 : i32, i32
  }
  func.func @transform_4(%arg0: i32, %arg1: i32, %arg2: i32) -> (i32, i32) {
    %c0_i32 = arith.constant 0 : i32
    %c0_i32_0 = arith.constant 0 : i32
    return %c0_i32, %arg1 : i32, i32
  }
  func.func @transform_5(%arg0: i32, %arg1: i32, %arg2: i32) -> (i32, i32) {
    %c0_i32 = arith.constant 0 : i32
    %c0_i32_0 = arith.constant 0 : i32
    return %c0_i32, %arg1 : i32, i32
  }
  func.func @transform_6(%arg0: i32, %arg1: i32, %arg2: i32) -> (i32, i32) {
    %c0_i32 = arith.constant 0 : i32
    return %arg0, %arg1 : i32, i32
  }
  func.func @transform_7(%arg0: i32, %arg1: i32, %arg2: i32) -> (i32, i32) {
    %c0_i32 = arith.constant 0 : i32
    return %arg0, %arg1 : i32, i32
  }
}

module attributes {stable_mosaic.version = 11 : i64} {
  func.func @_fc_vi_lr_kernel(%arg0: i32, %arg1: i32, %arg2: i32, %arg3: memref<64x128xbf16, #tpu.memory_space<vmem>>, %arg4: memref<64x128xbf16, #tpu.memory_space<vmem>>, %arg5: memref<128x128xbf16, #tpu.memory_space<vmem>>, %arg6: memref<128x128xbf16, #tpu.memory_space<vmem>>, %arg7: memref<1x128xf32, #tpu.memory_space<vmem>>, %arg8: memref<1x128xf32, #tpu.memory_space<vmem>>, %arg9: memref<64x128xbf16, #tpu.memory_space<vmem>>, %arg10: memref<64x128xf32, #tpu.memory_space<vmem>>, %arg11: memref<64x128xf32, #tpu.memory_space<vmem>>, %arg12: memref<64x128xf32, #tpu.memory_space<vmem>>) attributes {dimension_semantics = [#tpu.dimension_semantics<parallel>, #tpu.dimension_semantics<parallel>, #tpu.dimension_semantics<arbitrary>], iteration_bounds = array<i64: 1, 1, 1>, scalar_prefetch = 0 : i64, scratch_operands = 2 : i64, tpu.core_type = #tpu.core_type<tc>, window_params = [{transform_indices = @transform_0, window_bounds = array<i64: 64, 128>}, {transform_indices = @transform_1, window_bounds = array<i64: 64, 128>}, {transform_indices = @transform_2, window_bounds = array<i64: 128, 128>}, {transform_indices = @transform_3, window_bounds = array<i64: 128, 128>}, {transform_indices = @transform_4, window_bounds = array<i64: 1, 128>}, {transform_indices = @transform_5, window_bounds = array<i64: 1, 128>}, {transform_indices = @transform_6, window_bounds = array<i64: 64, 128>}, {transform_indices = @transform_7, window_bounds = array<i64: 64, 128>}]} {
    %c0_i32 = arith.constant 0 : i32
    %0 = arith.cmpi eq, %arg2, %c0_i32 : i32
    %1 = arith.extui %0 : i1 to i32
    %c0_i32_0 = arith.constant 0 : i32
    %2 = arith.cmpi ne, %1, %c0_i32_0 : i32
    scf.if %2 {
      %cst_19 = arith.constant 0.000000e+00 : f32
      %18 = vector.broadcast %cst_19 : f32 to vector<64x128xf32>
      %c0_20 = arith.constant 0 : index
      %c0_21 = arith.constant 0 : index
      %19 = vector.load %arg11[%c0_20, %c0_21] : memref<64x128xf32, #tpu.memory_space<vmem>>, vector<64x128xf32>
      tpu.vector_store %arg11[%c0_20, %c0_21], %18 {strides = array<i32>} : memref<64x128xf32, #tpu.memory_space<vmem>>, vector<64x128xf32>,
      %cst_22 = arith.constant 0.000000e+00 : f32
      %20 = vector.broadcast %cst_22 : f32 to vector<64x128xf32>
      %c0_23 = arith.constant 0 : index
      %c0_24 = arith.constant 0 : index
      %21 = vector.load %arg12[%c0_23, %c0_24] : memref<64x128xf32, #tpu.memory_space<vmem>>, vector<64x128xf32>
      tpu.vector_store %arg12[%c0_23, %c0_24], %20 {strides = array<i32>} : memref<64x128xf32, #tpu.memory_space<vmem>>, vector<64x128xf32>,
    } else {
    }
    %c0 = arith.constant 0 : index
    %c0_1 = arith.constant 0 : index
    %3 = vector.load %arg11[%c0, %c0_1] : memref<64x128xf32, #tpu.memory_space<vmem>>, vector<64x128xf32>
    %c0_2 = arith.constant 0 : index
    %c0_3 = arith.constant 0 : index
    %4 = vector.load %arg3[%c0_2, %c0_3] : memref<64x128xbf16, #tpu.memory_space<vmem>>, vector<64x128xbf16>
    %c0_4 = arith.constant 0 : index
    %c0_5 = arith.constant 0 : index
    %5 = vector.load %arg5[%c0_4, %c0_5] : memref<128x128xbf16, #tpu.memory_space<vmem>>, vector<128x128xbf16>
    %cst = arith.constant dense<0.000000e+00> : vector<64x128xf32>
    %6 = tpu.matmul %4, %5, %cst {dimension_numbers = #tpu.dot_dimension_numbers<[1], [0], [0], [1], [0, 0, 1, 1], [], []>} : vector<64x128xbf16>, vector<128x128xbf16>, vector<64x128xf32> -> vector<64x128xf32>
    %7 = arith.addf %3, %6 : vector<64x128xf32>
    %c0_6 = arith.constant 0 : index
    %c0_7 = arith.constant 0 : index
    %8 = vector.load %arg11[%c0_6, %c0_7] : memref<64x128xf32, #tpu.memory_space<vmem>>, vector<64x128xf32>
    tpu.vector_store %arg11[%c0_6, %c0_7], %7 {strides = array<i32>} : memref<64x128xf32, #tpu.memory_space<vmem>>, vector<64x128xf32>,
    %c0_8 = arith.constant 0 : index
    %c0_9 = arith.constant 0 : index
    %9 = vector.load %arg12[%c0_8, %c0_9] : memref<64x128xf32, #tpu.memory_space<vmem>>, vector<64x128xf32>
    %c0_10 = arith.constant 0 : index
    %c0_11 = arith.constant 0 : index
    %10 = vector.load %arg4[%c0_10, %c0_11] : memref<64x128xbf16, #tpu.memory_space<vmem>>, vector<64x128xbf16>
    %c0_12 = arith.constant 0 : index
    %c0_13 = arith.constant 0 : index
    %11 = vector.load %arg6[%c0_12, %c0_13] : memref<128x128xbf16, #tpu.memory_space<vmem>>, vector<128x128xbf16>
    %cst_14 = arith.constant dense<0.000000e+00> : vector<64x128xf32>
    %12 = tpu.matmul %10, %11, %cst_14 {dimension_numbers = #tpu.dot_dimension_numbers<[1], [0], [0], [1], [0, 0, 1, 1], [], []>} : vector<64x128xbf16>, vector<128x128xbf16>, vector<64x128xf32> -> vector<64x128xf32>
    %13 = arith.addf %9, %12 : vector<64x128xf32>
    %c0_15 = arith.constant 0 : index
    %c0_16 = arith.constant 0 : index
    %14 = vector.load %arg12[%c0_15, %c0_16] : memref<64x128xf32, #tpu.memory_space<vmem>>, vector<64x128xf32>
    tpu.vector_store %arg12[%c0_15, %c0_16], %13 {strides = array<i32>} : memref<64x128xf32, #tpu.memory_space<vmem>>, vector<64x128xf32>,
    %c0_i32_17 = arith.constant 0 : i32
    %15 = arith.cmpi eq, %arg2, %c0_i32_17 : i32
    %16 = arith.extui %15 : i1 to i32
    %c0_i32_18 = arith.constant 0 : i32
    %17 = arith.cmpi ne, %16, %c0_i32_18 : i32
    scf.if %17 {
      %c0_19 = arith.constant 0 : index
      %c0_20 = arith.constant 0 : index
      %18 = vector.load %arg11[%c0_19, %c0_20] : memref<64x128xf32, #tpu.memory_space<vmem>>, vector<64x128xf32>
      %c0_21 = arith.constant 0 : index
      %c0_22 = arith.constant 0 : index
      %19 = vector.load %arg7[%c0_21, %c0_22] : memref<1x128xf32, #tpu.memory_space<vmem>>, vector<1x128xf32>
      %20 = vector.broadcast %19 : vector<1x128xf32> to vector<64x128xf32>
      %21 = arith.addf %18, %20 : vector<64x128xf32>
      %c0_23 = arith.constant 0 : index
      %c0_24 = arith.constant 0 : index
      %22 = vector.load %arg12[%c0_23, %c0_24] : memref<64x128xf32, #tpu.memory_space<vmem>>, vector<64x128xf32>
      %c0_25 = arith.constant 0 : index
      %c0_26 = arith.constant 0 : index
      %23 = vector.load %arg8[%c0_25, %c0_26] : memref<1x128xf32, #tpu.memory_space<vmem>>, vector<1x128xf32>
      %24 = vector.broadcast %23 : vector<1x128xf32> to vector<64x128xf32>
      %25 = arith.addf %22, %24 : vector<64x128xf32>
      %c0_27 = arith.constant 0 : index
      %c0_28 = arith.constant 0 : index
      %26 = vector.load %arg9[%c0_27, %c0_28] : memref<64x128xbf16, #tpu.memory_space<vmem>>, vector<64x128xbf16>
      %27 = arith.extf %26 : vector<64x128xbf16> to vector<64x128xf32>
      %28 = math.sqrt %25 : vector<64x128xf32>
      %29 = arith.mulf %27, %28 : vector<64x128xf32>
      %30 = arith.addf %29, %21 : vector<64x128xf32>
      %c0_29 = arith.constant 0 : index
      %c0_30 = arith.constant 0 : index
      %31 = vector.load %arg10[%c0_29, %c0_30] : memref<64x128xf32, #tpu.memory_space<vmem>>, vector<64x128xf32>
      tpu.vector_store %arg10[%c0_29, %c0_30], %30 {strides = array<i32>} : memref<64x128xf32, #tpu.memory_space<vmem>>, vector<64x128xf32>,
    } else {
    }
    return
  }
  func.func @transform_0(%arg0: i32, %arg1: i32, %arg2: i32) -> (i32, i32) {
    %c0_i32 = arith.constant 0 : i32
    return %arg0, %arg2 : i32, i32
  }
  func.func @transform_1(%arg0: i32, %arg1: i32, %arg2: i32) -> (i32, i32) {
    %c0_i32 = arith.constant 0 : i32
    return %arg0, %arg2 : i32, i32
  }
  func.func @transform_2(%arg0: i32, %arg1: i32, %arg2: i32) -> (i32, i32) {
    %c0_i32 = arith.constant 0 : i32
    return %arg2, %arg1 : i32, i32
  }
  func.func @transform_3(%arg0: i32, %arg1: i32, %arg2: i32) -> (i32, i32) {
    %c0_i32 = arith.constant 0 : i32
    return %arg2, %arg1 : i32, i32
  }
  func.func @transform_4(%arg0: i32, %arg1: i32, %arg2: i32) -> (i32, i32) {
    %c0_i32 = arith.constant 0 : i32
    %c0_i32_0 = arith.constant 0 : i32
    return %c0_i32, %arg1 : i32, i32
  }
  func.func @transform_5(%arg0: i32, %arg1: i32, %arg2: i32) -> (i32, i32) {
    %c0_i32 = arith.constant 0 : i32
    %c0_i32_0 = arith.constant 0 : i32
    return %c0_i32, %arg1 : i32, i32
  }
  func.func @transform_6(%arg0: i32, %arg1: i32, %arg2: i32) -> (i32, i32) {
    %c0_i32 = arith.constant 0 : i32
    return %arg0, %arg1 : i32, i32
  }
  func.func @transform_7(%arg0: i32, %arg1: i32, %arg2: i32) -> (i32, i32) {
    %c0_i32 = arith.constant 0 : i32
    return %arg0, %arg1 : i32, i32
  }
}

</mosaic_0001>

<llo_original>
// kernel: mul.27
$region0: #{mul.27}
  #allocation0 [shape = 's32[1]{0}', space=sflag, size = 0x4, scoped, tag = 'scoped memory for mul.27']
  %s0 = inlined_call_operand.vmem [shape: f32[64,32], index: 0, kind: input, shape index: {}, may-alias: {0,1}]
  %s1 = inlined_call_operand.vmem [shape: f32[64,32], index: 1, kind: input, shape index: {}, may-alias: {0,1}]
  %s2 = inlined_call_operand.vmem [shape: bf16[64,32], index: 2, kind: output, shape index: {}]
  %v3 = vld [vmem:[%s0] sm:$0xff]
  %v4 = vld [vmem:[%s1] sm:$0xff]
  %5 = xla_tuple %v3, %v4
  %6 = xla_tuple %5
  %v7 = vmul.f32 %v3, %v4
  %8 = xla_tuple %v7
  %v9 = vpack.c.bf16 0.0, %v7
  %10 = vst [vmem:[%s2] sm:$0xf] %v9
  %s11 = scalar_lea.vmem %s0, 8
  %v12 = vld [vmem:[%s11] sm:$0xff]
  %s13 = scalar_lea.vmem %s1, 8
  %v14 = vld [vmem:[%s13] sm:$0xff]
  %15 = xla_tuple %v12, %v14
  %16 = xla_tuple %15
  %v17 = vmul.f32 %v12, %v14
  %18 = xla_tuple %v17
  %s19 = scalar_lea.vmem %s2, 4
  %v20 = vpack.c.bf16 0.0, %v17
  %21 = vst [vmem:[%s19] sm:$0xf] %v20
  %s22 = scalar_lea.vmem %s0, 16
  %v23 = vld [vmem:[%s22] sm:$0xff]
  %s24 = scalar_lea.vmem %s1, 16
  %v25 = vld [vmem:[%s24] sm:$0xff]
  %26 = xla_tuple %v23, %v25
  %27 = xla_tuple %26
  %v28 = vmul.f32 %v23, %v25
  %29 = xla_tuple %v28
  %s30 = scalar_lea.vmem %s2, 8
  %v31 = vpack.c.bf16 0.0, %v28
  %32 = vst [vmem:[%s30] sm:$0xf] %v31
  %s33 = scalar_lea.vmem %s0, 24
  %v34 = vld [vmem:[%s33] sm:$0xff]
  %s35 = scalar_lea.vmem %s1, 24
  %v36 = vld [vmem:[%s35] sm:$0xff]
  %37 = xla_tuple %v34, %v36
  %38 = xla_tuple %37
  %v39 = vmul.f32 %v34, %v36
  %40 = xla_tuple %v39
  %s41 = scalar_lea.vmem %s2, 12
  %v42 = vpack.c.bf16 0.0, %v39
  %43 = vst [vmem:[%s41] sm:$0xf] %v42

// kernel: _forward_impl.3
$region0: #{_forward_impl.3}
  #allocation0 [shape = 'u32[]', space=smem, size = 0x4, offset = 0x4, fixed_abs, tag = 'smem constant byte address 0x4 - core index']
  #allocation1 [shape = 'u32[144,128]{1,0:T(1,128)}', space=vmem, size = 0x12000, scoped, tag = 'internal scratch']
  #allocation2 [shape = 'f32[64,128]{1,0:T(8,128)}', space=vmem, size = 0x8000, scoped, tag = 'scratch operand']
  #allocation3 [shape = 'f32[64,128]{1,0:T(8,128)}', space=vmem, size = 0x8000, scoped, tag = 'scratch operand']
  %s0 = inlined_call_operand.vmem [shape: bf16[64,128], index: 0, kind: input, shape index: {}]
  %s1 = inlined_call_operand.vmem [shape: bf16[64,128], index: 1, kind: input, shape index: {}]
  %s2 = inlined_call_operand.vmem [shape: bf16[128,128], index: 2, kind: input, shape index: {}]
  %s3 = inlined_call_operand.vmem [shape: bf16[128,128], index: 3, kind: input, shape index: {}]
  %s4 = inlined_call_operand.vmem [shape: f32[1,128], index: 4, kind: input, shape index: {}]
  %s5 = inlined_call_operand.vmem [shape: f32[1,128], index: 5, kind: input, shape index: {}]
  %s6 = inlined_call_operand.vmem [shape: bf16[64,128], index: 6, kind: input, shape index: {}]
  %s7 = inlined_call_operand.vmem [shape: bf16[64,128], index: 7, kind: output, shape index: {}]
  %s8 = sld [smem:[#allocation0]]
  $region46: #{_forward_impl.3} parent=0
    _
  %s10 = ssub.s32 1, %s8
  %s11 = scalar_select 0, %s10, %s8
  // Predicated region
  $region2: #{_forward_impl.3} parent=0 // pred_check
    _
  $region3: #{_forward_impl.3} parent=0 // pred_check_branch
    %13 = sbr.rel (0) target = $region5
  $region4: #{_forward_impl.3} parent=0 // pred_region
    _
  $region5: #{_forward_impl.3} parent=0 // pred_fallthru
    _
  // Predicated region
  $region6: #{_forward_impl.3} parent=0 // pred_check
    _
  $region7: #{_forward_impl.3} parent=0 // pred_check_branch
    %15 = sbr.rel (0) target = $region9
  $region8: #{_forward_impl.3} parent=0 // pred_region
    _
  $region9: #{_forward_impl.3} parent=0 // pred_fallthru
    _
  // Predicated region
  $region10: #{_forward_impl.3} parent=0 // pred_check
    _
  $region11: #{_forward_impl.3} parent=0 // pred_check_branch
    %17 = sbr.rel (0) target = $region13
  $region12: #{_forward_impl.3} parent=0 // pred_region
    _
  $region13: #{_forward_impl.3} parent=0 // pred_fallthru
    _
  // Predicated region
  $region14: #{_forward_impl.3} parent=0 // pred_check
    _
  $region15: #{_forward_impl.3} parent=0 // pred_check_branch
    %19 = sbr.rel (0) target = $region17
  $region16: #{_forward_impl.3} parent=0 // pred_region
    _
  $region17: #{_forward_impl.3} parent=0 // pred_fallthru
    _
  // Predicated region
  $region18: #{_forward_impl.3} parent=0 // pred_check
    _
  $region19: #{_forward_impl.3} parent=0 // pred_check_branch
    %21 = sbr.rel (0) target = $region21
  $region20: #{_forward_impl.3} parent=0 // pred_region
    _
  $region21: #{_forward_impl.3} parent=0 // pred_fallthru
    _
  // Predicated region
  $region22: #{_forward_impl.3} parent=0 // pred_check
    _
  $region23: #{_forward_impl.3} parent=0 // pred_check_branch
    %23 = sbr.rel (0) target = $region25
  $region24: #{_forward_impl.3} parent=0 // pred_region
    _
  $region25: #{_forward_impl.3} parent=0 // pred_fallthru
    _
  // Predicated region
  $region26: #{_forward_impl.3} parent=0 // pred_check
    _
  $region27: #{_forward_impl.3} parent=0 // pred_check_branch
    %25 = sbr.rel (0) target = $region29
  $region28: #{_forward_impl.3} parent=0 // pred_region
    _
  $region29: #{_forward_impl.3} parent=0 // pred_fallthru
    _
  %p27 = scmp.eq.s32.totalorder 0, 0
  // Predicated region
  $region30: #{_forward_impl.3} parent=0 // pred_check
    %p28 = pneg %p27
  $region31: #{_forward_impl.3} parent=0 // pred_check_branch
    %30 = sbr.rel (%p28) target = $region33
  $region32: #{_forward_impl.3} parent=0 // pred_region
    %31 = vst [vmem:[#allocation2] sm:$0xff] 0.0
    %32 = vst [vmem:[#allocation2 + $0x8] sm:$0xff] 0.0
    %33 = vst [vmem:[#allocation2 + $0x10] sm:$0xff] 0.0
    %34 = vst [vmem:[#allocation2 + $0x18] sm:$0xff] 0.0
    %35 = vst [vmem:[#allocation2 + $0x20] sm:$0xff] 0.0
    %36 = vst [vmem:[#allocation2 + $0x28] sm:$0xff] 0.0
    %37 = vst [vmem:[#allocation2 + $0x30] sm:$0xff] 0.0
    %38 = vst [vmem:[#allocation2 + $0x38] sm:$0xff] 0.0
    %39 = vst [vmem:[#allocation3] sm:$0xff] 0.0
    %40 = vst [vmem:[#allocation3 + $0x8] sm:$0xff] 0.0
    %41 = vst [vmem:[#allocation3 + $0x10] sm:$0xff] 0.0
    %42 = vst [vmem:[#allocation3 + $0x18] sm:$0xff] 0.0
    %43 = vst [vmem:[#allocation3 + $0x20] sm:$0xff] 0.0
    %44 = vst [vmem:[#allocation3 + $0x28] sm:$0xff] 0.0
    %45 = vst [vmem:[#allocation3 + $0x30] sm:$0xff] 0.0
    %46 = vst [vmem:[#allocation3 + $0x38] sm:$0xff] 0.0
  $region33: #{_forward_impl.3} parent=0 // pred_fallthru
    _
  %v47 = vld [vmem:[#allocation2] sm:$0xff]
  %v48 = vld [vmem:[#allocation2 + $0x8] sm:$0xff]
  %v49 = vld [vmem:[#allocation2 + $0x10] sm:$0xff]
  %v50 = vld [vmem:[#allocation2 + $0x18] sm:$0xff]
  %v51 = vld [vmem:[#allocation2 + $0x20] sm:$0xff]
  %v52 = vld [vmem:[#allocation2 + $0x28] sm:$0xff]
  %v53 = vld [vmem:[#allocation2 + $0x30] sm:$0xff]
  %v54 = vld [vmem:[#allocation2 + $0x38] sm:$0xff]
  %v55 = vld [vmem:[%s0] sm:$0xf]
  %v56 = vld [vmem:[%s0 + $0x4] sm:$0xf]
  %v57 = vld [vmem:[%s0 + $0x8] sm:$0xf]
  %v58 = vld [vmem:[%s0 + $0xc] sm:$0xf]
  %v59 = vld [vmem:[%s0 + $0x10] sm:$0xf]
  %v60 = vld [vmem:[%s0 + $0x14] sm:$0xf]
  %v61 = vld [vmem:[%s0 + $0x18] sm:$0xf]
  %v62 = vld [vmem:[%s0 + $0x1c] sm:$0xf]
  %v63 = vld [vmem:[%s2] sm:$0xf]
  %v64 = vld [vmem:[%s2 + $0x4] sm:$0xf]
  %v65 = vld [vmem:[%s2 + $0x8] sm:$0xf]
  %v66 = vld [vmem:[%s2 + $0xc] sm:$0xf]
  %v67 = vld [vmem:[%s2 + $0x10] sm:$0xf]
  %v68 = vld [vmem:[%s2 + $0x14] sm:$0xf]
  %v69 = vld [vmem:[%s2 + $0x18] sm:$0xf]
  %v70 = vld [vmem:[%s2 + $0x1c] sm:$0xf]
  %v71 = vld [vmem:[%s2 + $0x20] sm:$0xf]
  %v72 = vld [vmem:[%s2 + $0x24] sm:$0xf]
  %v73 = vld [vmem:[%s2 + $0x28] sm:$0xf]
  %v74 = vld [vmem:[%s2 + $0x2c] sm:$0xf]
  %v75 = vld [vmem:[%s2 + $0x30] sm:$0xf]
  %v76 = vld [vmem:[%s2 + $0x34] sm:$0xf]
  %v77 = vld [vmem:[%s2 + $0x38] sm:$0xf]
  %v78 = vld [vmem:[%s2 + $0x3c] sm:$0xf]
  %v87 = vunpack.c.l.b16 %v55
  %v88 = vunpack.c.l.b16 %v56
  %v89 = vunpack.c.l.b16 %v57
  %v90 = vunpack.c.l.b16 %v58
  %v91 = vunpack.c.l.b16 %v59
  %v92 = vunpack.c.l.b16 %v60
  %v93 = vunpack.c.l.b16 %v61
  %v94 = vunpack.c.l.b16 %v62
  %v95 = vpack.c.b16 %v88, %v87
  %v96 = vpack.c.b16 %v90, %v89
  %v97 = vpack.c.b16 %v92, %v91
  %v98 = vpack.c.b16 %v94, %v93
  %v119 = vunpack.c.l.b16 %v63
  %v120 = vunpack.c.l.b16 %v64
  %v121 = vunpack.c.l.b16 %v65
  %v122 = vunpack.c.l.b16 %v66
  %v123 = vunpack.c.l.b16 %v67
  %v124 = vunpack.c.l.b16 %v68
  %v125 = vunpack.c.l.b16 %v69
  %v126 = vunpack.c.l.b16 %v70
  %v127 = vunpack.c.l.b16 %v71
  %v128 = vunpack.c.l.b16 %v72
  %v129 = vunpack.c.l.b16 %v73
  %v130 = vunpack.c.l.b16 %v74
  %v131 = vunpack.c.l.b16 %v75
  %v132 = vunpack.c.l.b16 %v76
  %v133 = vunpack.c.l.b16 %v77
  %v134 = vunpack.c.l.b16 %v78
  %v135 = vpack.c.b16 %v120, %v119
  %v136 = vpack.c.b16 %v122, %v121
  %v137 = vpack.c.b16 %v124, %v123
  %v138 = vpack.c.b16 %v126, %v125
  %v139 = vpack.c.b16 %v128, %v127
  %v140 = vpack.c.b16 %v130, %v129
  %v141 = vpack.c.b16 %v132, %v131
  %v142 = vpack.c.b16 %v134, %v133
  %151 = vmatprep.subr.bf16.mxu0 0
  %152 = vmatpush1.bf16.msra.mxu0 %v135
  %153 = vmatprep.subr.bf16.mxu0 0
  %154 = vmatpush1.bf16.msra.mxu0 %v136
  %155 = vmatprep.subr.bf16.mxu0 0
  %156 = vmatpush1.bf16.msra.mxu0 %v137
  %157 = vmatprep.subr.bf16.mxu0 0
  %158 = vmatpush1.bf16.msra.mxu0 %v138
  %159 = vmatprep.subr.bf16.mxu0 0
  %160 = vmatpush1.bf16.msra.mxu0 %v139
  %161 = vmatprep.subr.bf16.mxu0 0
  %162 = vmatpush1.bf16.msra.mxu0 %v140
  %163 = vmatprep.subr.bf16.mxu0 0
  %164 = vmatpush1.bf16.msra.mxu0 %v141
  %165 = vmatprep.subr.bf16.mxu0 0
  %166 = vmatpush1.bf16.msra.mxu0 %v142
  %167 = vmatprep.subr.bf16.mxu0 0
  %168 = vmatpush1.bf16.msra.mxu0 0
  %169 = vmatprep.subr.bf16.mxu0 0
  %170 = vmatpush1.bf16.msra.mxu0 0
  %171 = vmatprep.subr.bf16.mxu0 0
  %172 = vmatpush1.bf16.msra.mxu0 0
  %173 = vmatprep.subr.bf16.mxu0 0
  %174 = vmatpush1.bf16.msra.mxu0 0
  %175 = vmatprep.subr.bf16.mxu0 0
  %176 = vmatpush1.bf16.msra.mxu0 0
  %177 = vmatprep.subr.bf16.mxu0 0
  %178 = vmatpush1.bf16.msra.mxu0 0
  %179 = vmatprep.subr.bf16.mxu0 0
  %180 = vmatpush1.bf16.msra.mxu0 0
  %181 = vmatprep.subr.bf16.mxu0 0
  %182 = vmatpush1.bf16.msra.mxu0 0
  %183 = vmatprep.mubr.bf16.mxu0 0
  %184 = vmatmul.mubr.bf16.gmra.mrb[0].mxu0 %v95
  %v185 = vpop.f32.mrb[0].mxu0
  %v186 = vadd.f32 0.0, %v185
  %v187 = vpop.f32.mrb[0].mxu0
  %v188 = vpop.f32.mrb[0].mxu0
  %v189 = vadd.f32 0.0, %v188
  %v190 = vpop.f32.mrb[0].mxu0
  %191 = vmatprep.mubr.bf16.mxu0 0
  %192 = vmatmul.mubr.bf16.gmra.mrb[0].mxu0 %v96
  %v193 = vpop.f32.mrb[0].mxu0
  %v194 = vadd.f32 0.0, %v193
  %v195 = vpop.f32.mrb[0].mxu0
  %v196 = vpop.f32.mrb[0].mxu0
  %v197 = vadd.f32 0.0, %v196
  %v198 = vpop.f32.mrb[0].mxu0
  %199 = vmatprep.mubr.bf16.mxu0 0
  %200 = vmatmul.mubr.bf16.gmra.mrb[0].mxu0 %v97
  %v201 = vpop.f32.mrb[0].mxu0
  %v202 = vadd.f32 0.0, %v201
  %v203 = vpop.f32.mrb[0].mxu0
  %v204 = vpop.f32.mrb[0].mxu0
  %v205 = vadd.f32 0.0, %v204
  %v206 = vpop.f32.mrb[0].mxu0
  %207 = vmatprep.mubr.bf16.mxu0 0
  %208 = vmatmul.mubr.bf16.gmra.mrb[0].mxu0 %v98
  %v209 = vpop.f32.mrb[0].mxu0
  %v210 = vadd.f32 0.0, %v209
  %v211 = vpop.f32.mrb[0].mxu0
  %v212 = vpop.f32.mrb[0].mxu0
  %v213 = vadd.f32 0.0, %v212
  %v214 = vpop.f32.mrb[0].mxu0
  %215 = vdwg.mxu0
  %v216 = vadd.f32 %v47, %v186
  %v217 = vadd.f32 %v48, %v189
  %v218 = vadd.f32 %v49, %v194
  %v219 = vadd.f32 %v50, %v197
  %v220 = vadd.f32 %v51, %v202
  %v221 = vadd.f32 %v52, %v205
  %v222 = vadd.f32 %v53, %v210
  %v223 = vadd.f32 %v54, %v213
  %224 = vst [vmem:[#allocation2] sm:$0xff] %v216
  %225 = vst [vmem:[#allocation2 + $0x8] sm:$0xff] %v217
  %226 = vst [vmem:[#allocation2 + $0x10] sm:$0xff] %v218
  %227 = vst [vmem:[#allocation2 + $0x18] sm:$0xff] %v219
  %228 = vst [vmem:[#allocation2 + $0x20] sm:$0xff] %v220
  %229 = vst [vmem:[#allocation2 + $0x28] sm:$0xff] %v221
  %230 = vst [vmem:[#allocation2 + $0x30] sm:$0xff] %v222
  %231 = vst [vmem:[#allocation2 + $0x38] sm:$0xff] %v223
  %v232 = vld [vmem:[#allocation3] sm:$0xff]
  %v233 = vld [vmem:[#allocation3 + $0x8] sm:$0xff]
  %v234 = vld [vmem:[#allocation3 + $0x10] sm:$0xff]
  %v235 = vld [vmem:[#allocation3 + $0x18] sm:$0xff]
  %v236 = vld [vmem:[#allocation3 + $0x20] sm:$0xff]
  %v237 = vld [vmem:[#allocation3 + $0x28] sm:$0xff]
  %v238 = vld [vmem:[#allocation3 + $0x30] sm:$0xff]
  %v239 = vld [vmem:[#allocation3 + $0x38] sm:$0xff]
  %v240 = vld [vmem:[%s1] sm:$0xf]
  %v241 = vld [vmem:[%s1 + $0x4] sm:$0xf]
  %v242 = vld [vmem:[%s1 + $0x8] sm:$0xf]
  %v243 = vld [vmem:[%s1 + $0xc] sm:$0xf]
  %v244 = vld [vmem:[%s1 + $0x10] sm:$0xf]
  %v245 = vld [vmem:[%s1 + $0x14] sm:$0xf]
  %v246 = vld [vmem:[%s1 + $0x18] sm:$0xf]
  %v247 = vld [vmem:[%s1 + $0x1c] sm:$0xf]
  %v248 = vld [vmem:[%s3] sm:$0xf]
  %v249 = vld [vmem:[%s3 + $0x4] sm:$0xf]
  %v250 = vld [vmem:[%s3 + $0x8] sm:$0xf]
  %v251 = vld [vmem:[%s3 + $0xc] sm:$0xf]
  %v252 = vld [vmem:[%s3 + $0x10] sm:$0xf]
  %v253 = vld [vmem:[%s3 + $0x14] sm:$0xf]
  %v254 = vld [vmem:[%s3 + $0x18] sm:$0xf]
  %v255 = vld [vmem:[%s3 + $0x1c] sm:$0xf]
  %v256 = vld [vmem:[%s3 + $0x20] sm:$0xf]
  %v257 = vld [vmem:[%s3 + $0x24] sm:$0xf]
  %v258 = vld [vmem:[%s3 + $0x28] sm:$0xf]
  %v259 = vld [vmem:[%s3 + $0x2c] sm:$0xf]
  %v260 = vld [vmem:[%s3 + $0x30] sm:$0xf]
  %v261 = vld [vmem:[%s3 + $0x34] sm:$0xf]
  %v262 = vld [vmem:[%s3 + $0x38] sm:$0xf]
  %v263 = vld [vmem:[%s3 + $0x3c] sm:$0xf]
  %v272 = vunpack.c.l.b16 %v240
  %v273 = vunpack.c.l.b16 %v241
  %v274 = vunpack.c.l.b16 %v242
  %v275 = vunpack.c.l.b16 %v243
  %v276 = vunpack.c.l.b16 %v244
  %v277 = vunpack.c.l.b16 %v245
  %v278 = vunpack.c.l.b16 %v246
  %v279 = vunpack.c.l.b16 %v247
  %v280 = vpack.c.b16 %v273, %v272
  %v281 = vpack.c.b16 %v275, %v274
  %v282 = vpack.c.b16 %v277, %v276
  %v283 = vpack.c.b16 %v279, %v278
  %v304 = vunpack.c.l.b16 %v248
  %v305 = vunpack.c.l.b16 %v249
  %v306 = vunpack.c.l.b16 %v250
  %v307 = vunpack.c.l.b16 %v251
  %v308 = vunpack.c.l.b16 %v252
  %v309 = vunpack.c.l.b16 %v253
  %v310 = vunpack.c.l.b16 %v254
  %v311 = vunpack.c.l.b16 %v255
  %v312 = vunpack.c.l.b16 %v256
  %v313 = vunpack.c.l.b16 %v257
  %v314 = vunpack.c.l.b16 %v258
  %v315 = vunpack.c.l.b16 %v259
  %v316 = vunpack.c.l.b16 %v260
  %v317 = vunpack.c.l.b16 %v261
  %v318 = vunpack.c.l.b16 %v262
  %v319 = vunpack.c.l.b16 %v263
  %v320 = vpack.c.b16 %v305, %v304
  %v321 = vpack.c.b16 %v307, %v306
  %v322 = vpack.c.b16 %v309, %v308
  %v323 = vpack.c.b16 %v311, %v310
  %v324 = vpack.c.b16 %v313, %v312
  %v325 = vpack.c.b16 %v315, %v314
  %v326 = vpack.c.b16 %v317, %v316
  %v327 = vpack.c.b16 %v319, %v318
  %336 = vmatprep.subr.bf16.mxu0 0
  %337 = vmatpush1.bf16.msra.mxu0 %v320
  %338 = vmatprep.subr.bf16.mxu0 0
  %339 = vmatpush1.bf16.msra.mxu0 %v321
  %340 = vmatprep.subr.bf16.mxu0 0
  %341 = vmatpush1.bf16.msra.mxu0 %v322
  %342 = vmatprep.subr.bf16.mxu0 0
  %343 = vmatpush1.bf16.msra.mxu0 %v323
  %344 = vmatprep.subr.bf16.mxu0 0
  %345 = vmatpush1.bf16.msra.mxu0 %v324
  %346 = vmatprep.subr.bf16.mxu0 0
  %347 = vmatpush1.bf16.msra.mxu0 %v325
  %348 = vmatprep.subr.bf16.mxu0 0
  %349 = vmatpush1.bf16.msra.mxu0 %v326
  %350 = vmatprep.subr.bf16.mxu0 0
  %351 = vmatpush1.bf16.msra.mxu0 %v327
  %352 = vmatprep.subr.bf16.mxu0 0
  %353 = vmatpush1.bf16.msra.mxu0 0
  %354 = vmatprep.subr.bf16.mxu0 0
  %355 = vmatpush1.bf16.msra.mxu0 0
  %356 = vmatprep.subr.bf16.mxu0 0
  %357 = vmatpush1.bf16.msra.mxu0 0
  %358 = vmatprep.subr.bf16.mxu0 0
  %359 = vmatpush1.bf16.msra.mxu0 0
  %360 = vmatprep.subr.bf16.mxu0 0
  %361 = vmatpush1.bf16.msra.mxu0 0
  %362 = vmatprep.subr.bf16.mxu0 0
  %363 = vmatpush1.bf16.msra.mxu0 0
  %364 = vmatprep.subr.bf16.mxu0 0
  %365 = vmatpush1.bf16.msra.mxu0 0
  %366 = vmatprep.subr.bf16.mxu0 0
  %367 = vmatpush1.bf16.msra.mxu0 0
  %368 = vmatprep.mubr.bf16.mxu0 0
  %369 = vmatmul.mubr.bf16.gmra.mrb[0].mxu0 %v280
  %v370 = vpop.f32.mrb[0].mxu0
  %v371 = vadd.f32 0.0, %v370
  %v372 = vpop.f32.mrb[0].mxu0
  %v373 = vpop.f32.mrb[0].mxu0
  %v374 = vadd.f32 0.0, %v373
  %v375 = vpop.f32.mrb[0].mxu0
  %376 = vmatprep.mubr.bf16.mxu0 0
  %377 = vmatmul.mubr.bf16.gmra.mrb[0].mxu0 %v281
  %v378 = vpop.f32.mrb[0].mxu0
  %v379 = vadd.f32 0.0, %v378
  %v380 = vpop.f32.mrb[0].mxu0
  %v381 = vpop.f32.mrb[0].mxu0
  %v382 = vadd.f32 0.0, %v381
  %v383 = vpop.f32.mrb[0].mxu0
  %384 = vmatprep.mubr.bf16.mxu0 0
  %385 = vmatmul.mubr.bf16.gmra.mrb[0].mxu0 %v282
  %v386 = vpop.f32.mrb[0].mxu0
  %v387 = vadd.f32 0.0, %v386
  %v388 = vpop.f32.mrb[0].mxu0
  %v389 = vpop.f32.mrb[0].mxu0
  %v390 = vadd.f32 0.0, %v389
  %v391 = vpop.f32.mrb[0].mxu0
  %392 = vmatprep.mubr.bf16.mxu0 0
  %393 = vmatmul.mubr.bf16.gmra.mrb[0].mxu0 %v283
  %v394 = vpop.f32.mrb[0].mxu0
  %v395 = vadd.f32 0.0, %v394
  %v396 = vpop.f32.mrb[0].mxu0
  %v397 = vpop.f32.mrb[0].mxu0
  %v398 = vadd.f32 0.0, %v397
  %v399 = vpop.f32.mrb[0].mxu0
  %400 = vdwg.mxu0
  %v401 = vadd.f32 %v232, %v371
  %v402 = vadd.f32 %v233, %v374
  %v403 = vadd.f32 %v234, %v379
  %v404 = vadd.f32 %v235, %v382
  %v405 = vadd.f32 %v236, %v387
  %v406 = vadd.f32 %v237, %v390
  %v407 = vadd.f32 %v238, %v395
  %v408 = vadd.f32 %v239, %v398
  %409 = vst [vmem:[#allocation3] sm:$0xff] %v401
  %410 = vst [vmem:[#allocation3 + $0x8] sm:$0xff] %v402
  %411 = vst [vmem:[#allocation3 + $0x10] sm:$0xff] %v403
  %412 = vst [vmem:[#allocation3 + $0x18] sm:$0xff] %v404
  %413 = vst [vmem:[#allocation3 + $0x20] sm:$0xff] %v405
  %414 = vst [vmem:[#allocation3 + $0x28] sm:$0xff] %v406
  %415 = vst [vmem:[#allocation3 + $0x30] sm:$0xff] %v407
  %416 = vst [vmem:[#allocation3 + $0x38] sm:$0xff] %v408
  // Predicated region
  $region34: #{_forward_impl.3} parent=0 // pred_check
    %p417 = pneg %p27
  $region35: #{_forward_impl.3} parent=0 // pred_check_branch
    %419 = sbr.rel (%p417) target = $region37
  $region36: #{_forward_impl.3} parent=0 // pred_region
    %v420 = vld [vmem:[#allocation2] sm:$0xff]
    %v421 = vld [vmem:[#allocation2 + $0x8] sm:$0xff]
    %v422 = vld [vmem:[#allocation2 + $0x10] sm:$0xff]
    %v423 = vld [vmem:[#allocation2 + $0x18] sm:$0xff]
    %v424 = vld [vmem:[#allocation2 + $0x20] sm:$0xff]
    %v425 = vld [vmem:[#allocation2 + $0x28] sm:$0xff]
    %v426 = vld [vmem:[#allocation2 + $0x30] sm:$0xff]
    %v427 = vld [vmem:[#allocation2 + $0x38] sm:$0xff]
    %v428 = vld [vmem:[%s4] sm:$0x1]
    %v430 = vlaneseq
    %v431 = vshrl.u32 %v430, 7
    %v432 = vsub.s32 0, %v431
    %v433 = vrot.slane %v428, %v432
    %v435 = vadd.f32 %v420, %v433
    %v436 = vadd.f32 %v421, %v433
    %v437 = vadd.f32 %v422, %v433
    %v438 = vadd.f32 %v423, %v433
    %v439 = vadd.f32 %v424, %v433
    %v440 = vadd.f32 %v425, %v433
    %v441 = vadd.f32 %v426, %v433
    %v442 = vadd.f32 %v427, %v433
    %v443 = vld [vmem:[#allocation3] sm:$0xff]
    %v444 = vld [vmem:[#allocation3 + $0x8] sm:$0xff]
    %v445 = vld [vmem:[#allocation3 + $0x10] sm:$0xff]
    %v446 = vld [vmem:[#allocation3 + $0x18] sm:$0xff]
    %v447 = vld [vmem:[#allocation3 + $0x20] sm:$0xff]
    %v448 = vld [vmem:[#allocation3 + $0x28] sm:$0xff]
    %v449 = vld [vmem:[#allocation3 + $0x30] sm:$0xff]
    %v450 = vld [vmem:[#allocation3 + $0x38] sm:$0xff]
    %v451 = vld [vmem:[%s5] sm:$0x1]
    %v453 = vlaneseq
    %v454 = vshrl.u32 %v453, 7
    %v455 = vsub.s32 0, %v454
    %v456 = vrot.slane %v451, %v455
    %v458 = vadd.f32 %v443, %v456
    %v459 = vadd.f32 %v444, %v456
    %v460 = vadd.f32 %v445, %v456
    %v461 = vadd.f32 %v446, %v456
    %v462 = vadd.f32 %v447, %v456
    %v463 = vadd.f32 %v448, %v456
    %v464 = vadd.f32 %v449, %v456
    %v465 = vadd.f32 %v450, %v456
    %v466 = vld [vmem:[%s6] sm:$0xf]
    %v467 = vld [vmem:[%s6 + $0x4] sm:$0xf]
    %v468 = vld [vmem:[%s6 + $0x8] sm:$0xf]
    %v469 = vld [vmem:[%s6 + $0xc] sm:$0xf]
    %v470 = vld [vmem:[%s6 + $0x10] sm:$0xf]
    %v471 = vld [vmem:[%s6 + $0x14] sm:$0xf]
    %v472 = vld [vmem:[%s6 + $0x18] sm:$0xf]
    %v473 = vld [vmem:[%s6 + $0x1c] sm:$0xf]
    %v474 = vunpack.c.l.bf16 %v466
    %v475 = vunpack.c.l.bf16 %v467
    %v476 = vunpack.c.l.bf16 %v468
    %v477 = vunpack.c.l.bf16 %v469
    %v478 = vunpack.c.l.bf16 %v470
    %v479 = vunpack.c.l.bf16 %v471
    %v480 = vunpack.c.l.bf16 %v472
    %v481 = vunpack.c.l.bf16 %v473
    %v482 = vrsqrt.pop %v458
    %v483 = vmul.f32 %v458, %v482
    %vm484 = vcmp.eq.f32.partialorder %v458, inf
    %v485 = vsel %vm484, %v458, %v483
    %vm486 = vcmp.eq.f32.partialorder %v458, 0.0
    %v487 = vand.u32 %v458, 2147483648
    %v488 = vsel %vm486, %v487, %v485
    %v489 = vrsqrt.pop %v459
    %v490 = vmul.f32 %v459, %v489
    %vm491 = vcmp.eq.f32.partialorder %v459, inf
    %v492 = vsel %vm491, %v459, %v490
    %vm493 = vcmp.eq.f32.partialorder %v459, 0.0
    %v494 = vand.u32 %v459, 2147483648
    %v495 = vsel %vm493, %v494, %v492
    %v496 = vrsqrt.pop %v460
    %v497 = vmul.f32 %v460, %v496
    %vm498 = vcmp.eq.f32.partialorder %v460, inf
    %v499 = vsel %vm498, %v460, %v497
    %vm500 = vcmp.eq.f32.partialorder %v460, 0.0
    %v501 = vand.u32 %v460, 2147483648
    %v502 = vsel %vm500, %v501, %v499
    %v503 = vrsqrt.pop %v461
    %v504 = vmul.f32 %v461, %v503
    %vm505 = vcmp.eq.f32.partialorder %v461, inf
    %v506 = vsel %vm505, %v461, %v504
    %vm507 = vcmp.eq.f32.partialorder %v461, 0.0
    %v508 = vand.u32 %v461, 2147483648
    %v509 = vsel %vm507, %v508, %v506
    %v510 = vrsqrt.pop %v462
    %v511 = vmul.f32 %v462, %v510
    %vm512 = vcmp.eq.f32.partialorder %v462, inf
    %v513 = vsel %vm512, %v462, %v511
    %vm514 = vcmp.eq.f32.partialorder %v462, 0.0
    %v515 = vand.u32 %v462, 2147483648
    %v516 = vsel %vm514, %v515, %v513
    %v517 = vrsqrt.pop %v463
    %v518 = vmul.f32 %v463, %v517
    %vm519 = vcmp.eq.f32.partialorder %v463, inf
    %v520 = vsel %vm519, %v463, %v518
    %vm521 = vcmp.eq.f32.partialorder %v463, 0.0
    %v522 = vand.u32 %v463, 2147483648
    %v523 = vsel %vm521, %v522, %v520
    %v524 = vrsqrt.pop %v464
    %v525 = vmul.f32 %v464, %v524
    %vm526 = vcmp.eq.f32.partialorder %v464, inf
    %v527 = vsel %vm526, %v464, %v525
    %vm528 = vcmp.eq.f32.partialorder %v464, 0.0
    %v529 = vand.u32 %v464, 2147483648
    %v530 = vsel %vm528, %v529, %v527
    %v531 = vrsqrt.pop %v465
    %v532 = vmul.f32 %v465, %v531
    %vm533 = vcmp.eq.f32.partialorder %v465, inf
    %v534 = vsel %vm533, %v465, %v532
    %vm535 = vcmp.eq.f32.partialorder %v465, 0.0
    %v536 = vand.u32 %v465, 2147483648
    %v537 = vsel %vm535, %v536, %v534
    %v538 = vmul.f32 %v474, %v488
    %v539 = vmul.f32 %v475, %v495
    %v540 = vmul.f32 %v476, %v502
    %v541 = vmul.f32 %v477, %v509
    %v542 = vmul.f32 %v478, %v516
    %v543 = vmul.f32 %v479, %v523
    %v544 = vmul.f32 %v480, %v530
    %v545 = vmul.f32 %v481, %v537
    %v546 = vadd.f32 %v538, %v435
    %v547 = vadd.f32 %v539, %v436
    %v548 = vadd.f32 %v540, %v437
    %v549 = vadd.f32 %v541, %v438
    %v550 = vadd.f32 %v542, %v439
    %v551 = vadd.f32 %v543, %v440
    %v552 = vadd.f32 %v544, %v441
    %v553 = vadd.f32 %v545, %v442
    %v554 = vmax.f32 %v546, 0.0
    %v555 = vmax.f32 %v547, 0.0
    %v556 = vmax.f32 %v548, 0.0
    %v557 = vmax.f32 %v549, 0.0
    %v558 = vmax.f32 %v550, 0.0
    %v559 = vmax.f32 %v551, 0.0
    %v560 = vmax.f32 %v552, 0.0
    %v561 = vmax.f32 %v553, 0.0
    %v562 = vpack.c.bf16 %v555, %v554
    %v563 = vpack.c.bf16 %v557, %v556
    %v564 = vpack.c.bf16 %v559, %v558
    %v565 = vpack.c.bf16 %v561, %v560
    %v570 = vunpack.c.l.b16 %v562
    %v571 = vunpack.c.h.b16 %v562
    %v572 = vunpack.c.l.b16 %v563
    %v573 = vunpack.c.h.b16 %v563
    %v574 = vunpack.c.l.b16 %v564
    %v575 = vunpack.c.h.b16 %v564
    %v576 = vunpack.c.l.b16 %v565
    %v577 = vunpack.c.h.b16 %v565
    %v578 = vpack.c.b16 %v570, %v570
    %v579 = vpack.c.b16 %v571, %v571
    %v580 = vpack.c.b16 %v572, %v572
    %v581 = vpack.c.b16 %v573, %v573
    %v582 = vpack.c.b16 %v574, %v574
    %v583 = vpack.c.b16 %v575, %v575
    %v584 = vpack.c.b16 %v576, %v576
    %v585 = vpack.c.b16 %v577, %v577
    %594 = vst [vmem:[%s7] sm:$0xf] %v578
    %595 = vst [vmem:[%s7 + $0x4] sm:$0xf] %v579
    %596 = vst [vmem:[%s7 + $0x8] sm:$0xf] %v580
    %597 = vst [vmem:[%s7 + $0xc] sm:$0xf] %v581
    %598 = vst [vmem:[%s7 + $0x10] sm:$0xf] %v582
    %599 = vst [vmem:[%s7 + $0x14] sm:$0xf] %v583
    %600 = vst [vmem:[%s7 + $0x18] sm:$0xf] %v584
    %601 = vst [vmem:[%s7 + $0x1c] sm:$0xf] %v585
  $region37: #{_forward_impl.3} parent=0 // pred_fallthru
    _
  // Predicated region
  $region38: #{_forward_impl.3} parent=0 // pred_check
    _
  $region39: #{_forward_impl.3} parent=0 // pred_check_branch
    %603 = sbr.rel (0) target = $region41
  $region40: #{_forward_impl.3} parent=0 // pred_region
    _
  $region41: #{_forward_impl.3} parent=0 // pred_fallthru
    _
  // Predicated region
  $region42: #{_forward_impl.3} parent=0 // pred_check
    _
  $region43: #{_forward_impl.3} parent=0 // pred_check_branch
    %605 = sbr.rel (0) target = $region45
  $region44: #{_forward_impl.3} parent=0 // pred_region
    _
  $region45: #{_forward_impl.3} parent=0 // pred_fallthru
    _

// kernel: _forward_impl.5
$region0: #{_forward_impl.5}
  #allocation0 [shape = 'u32[]', space=smem, size = 0x4, offset = 0x4, fixed_abs, tag = 'smem constant byte address 0x4 - core index']
  #allocation1 [shape = 'u32[144,128]{1,0:T(1,128)}', space=vmem, size = 0x12000, scoped, tag = 'internal scratch']
  #allocation2 [shape = 'f32[64,128]{1,0:T(8,128)}', space=vmem, size = 0x8000, scoped, tag = 'scratch operand']
  #allocation3 [shape = 'f32[64,128]{1,0:T(8,128)}', space=vmem, size = 0x8000, scoped, tag = 'scratch operand']
  %s0 = inlined_call_operand.vmem [shape: bf16[64,128], index: 0, kind: input, shape index: {}]
  %s1 = inlined_call_operand.vmem [shape: bf16[64,128], index: 1, kind: input, shape index: {}]
  %s2 = inlined_call_operand.vmem [shape: bf16[128,128], index: 2, kind: input, shape index: {}]
  %s3 = inlined_call_operand.vmem [shape: bf16[128,128], index: 3, kind: input, shape index: {}]
  %s4 = inlined_call_operand.vmem [shape: f32[1,128], index: 4, kind: input, shape index: {}]
  %s5 = inlined_call_operand.vmem [shape: f32[1,128], index: 5, kind: input, shape index: {}]
  %s6 = inlined_call_operand.vmem [shape: bf16[64,128], index: 6, kind: input, shape index: {}]
  %s7 = inlined_call_operand.vmem [shape: f32[64,128], index: 7, kind: output, shape index: {}]
  %s8 = sld [smem:[#allocation0]]
  $region46: #{_forward_impl.5} parent=0
    _
  %s10 = ssub.s32 1, %s8
  %s11 = scalar_select 0, %s10, %s8
  // Predicated region
  $region2: #{_forward_impl.5} parent=0 // pred_check
    _
  $region3: #{_forward_impl.5} parent=0 // pred_check_branch
    %13 = sbr.rel (0) target = $region5
  $region4: #{_forward_impl.5} parent=0 // pred_region
    _
  $region5: #{_forward_impl.5} parent=0 // pred_fallthru
    _
  // Predicated region
  $region6: #{_forward_impl.5} parent=0 // pred_check
    _
  $region7: #{_forward_impl.5} parent=0 // pred_check_branch
    %15 = sbr.rel (0) target = $region9
  $region8: #{_forward_impl.5} parent=0 // pred_region
    _
  $region9: #{_forward_impl.5} parent=0 // pred_fallthru
    _
  // Predicated region
  $region10: #{_forward_impl.5} parent=0 // pred_check
    _
  $region11: #{_forward_impl.5} parent=0 // pred_check_branch
    %17 = sbr.rel (0) target = $region13
  $region12: #{_forward_impl.5} parent=0 // pred_region
    _
  $region13: #{_forward_impl.5} parent=0 // pred_fallthru
    _
  // Predicated region
  $region14: #{_forward_impl.5} parent=0 // pred_check
    _
  $region15: #{_forward_impl.5} parent=0 // pred_check_branch
    %19 = sbr.rel (0) target = $region17
  $region16: #{_forward_impl.5} parent=0 // pred_region
    _
  $region17: #{_forward_impl.5} parent=0 // pred_fallthru
    _
  // Predicated region
  $region18: #{_forward_impl.5} parent=0 // pred_check
    _
  $region19: #{_forward_impl.5} parent=0 // pred_check_branch
    %21 = sbr.rel (0) target = $region21
  $region20: #{_forward_impl.5} parent=0 // pred_region
    _
  $region21: #{_forward_impl.5} parent=0 // pred_fallthru
    _
  // Predicated region
  $region22: #{_forward_impl.5} parent=0 // pred_check
    _
  $region23: #{_forward_impl.5} parent=0 // pred_check_branch
    %23 = sbr.rel (0) target = $region25
  $region24: #{_forward_impl.5} parent=0 // pred_region
    _
  $region25: #{_forward_impl.5} parent=0 // pred_fallthru
    _
  // Predicated region
  $region26: #{_forward_impl.5} parent=0 // pred_check
    _
  $region27: #{_forward_impl.5} parent=0 // pred_check_branch
    %25 = sbr.rel (0) target = $region29
  $region28: #{_forward_impl.5} parent=0 // pred_region
    _
  $region29: #{_forward_impl.5} parent=0 // pred_fallthru
    _
  %p27 = scmp.eq.s32.totalorder 0, 0
  // Predicated region
  $region30: #{_forward_impl.5} parent=0 // pred_check
    %p28 = pneg %p27
  $region31: #{_forward_impl.5} parent=0 // pred_check_branch
    %30 = sbr.rel (%p28) target = $region33
  $region32: #{_forward_impl.5} parent=0 // pred_region
    %31 = vst [vmem:[#allocation2] sm:$0xff] 0.0
    %32 = vst [vmem:[#allocation2 + $0x8] sm:$0xff] 0.0
    %33 = vst [vmem:[#allocation2 + $0x10] sm:$0xff] 0.0
    %34 = vst [vmem:[#allocation2 + $0x18] sm:$0xff] 0.0
    %35 = vst [vmem:[#allocation2 + $0x20] sm:$0xff] 0.0
    %36 = vst [vmem:[#allocation2 + $0x28] sm:$0xff] 0.0
    %37 = vst [vmem:[#allocation2 + $0x30] sm:$0xff] 0.0
    %38 = vst [vmem:[#allocation2 + $0x38] sm:$0xff] 0.0
    %39 = vst [vmem:[#allocation3] sm:$0xff] 0.0
    %40 = vst [vmem:[#allocation3 + $0x8] sm:$0xff] 0.0
    %41 = vst [vmem:[#allocation3 + $0x10] sm:$0xff] 0.0
    %42 = vst [vmem:[#allocation3 + $0x18] sm:$0xff] 0.0
    %43 = vst [vmem:[#allocation3 + $0x20] sm:$0xff] 0.0
    %44 = vst [vmem:[#allocation3 + $0x28] sm:$0xff] 0.0
    %45 = vst [vmem:[#allocation3 + $0x30] sm:$0xff] 0.0
    %46 = vst [vmem:[#allocation3 + $0x38] sm:$0xff] 0.0
  $region33: #{_forward_impl.5} parent=0 // pred_fallthru
    _
  %v47 = vld [vmem:[#allocation2] sm:$0xff]
  %v48 = vld [vmem:[#allocation2 + $0x8] sm:$0xff]
  %v49 = vld [vmem:[#allocation2 + $0x10] sm:$0xff]
  %v50 = vld [vmem:[#allocation2 + $0x18] sm:$0xff]
  %v51 = vld [vmem:[#allocation2 + $0x20] sm:$0xff]
  %v52 = vld [vmem:[#allocation2 + $0x28] sm:$0xff]
  %v53 = vld [vmem:[#allocation2 + $0x30] sm:$0xff]
  %v54 = vld [vmem:[#allocation2 + $0x38] sm:$0xff]
  %v55 = vld [vmem:[%s0] sm:$0xf]
  %v56 = vld [vmem:[%s0 + $0x4] sm:$0xf]
  %v57 = vld [vmem:[%s0 + $0x8] sm:$0xf]
  %v58 = vld [vmem:[%s0 + $0xc] sm:$0xf]
  %v59 = vld [vmem:[%s0 + $0x10] sm:$0xf]
  %v60 = vld [vmem:[%s0 + $0x14] sm:$0xf]
  %v61 = vld [vmem:[%s0 + $0x18] sm:$0xf]
  %v62 = vld [vmem:[%s0 + $0x1c] sm:$0xf]
  %v63 = vld [vmem:[%s2] sm:$0xf]
  %v64 = vld [vmem:[%s2 + $0x4] sm:$0xf]
  %v65 = vld [vmem:[%s2 + $0x8] sm:$0xf]
  %v66 = vld [vmem:[%s2 + $0xc] sm:$0xf]
  %v67 = vld [vmem:[%s2 + $0x10] sm:$0xf]
  %v68 = vld [vmem:[%s2 + $0x14] sm:$0xf]
  %v69 = vld [vmem:[%s2 + $0x18] sm:$0xf]
  %v70 = vld [vmem:[%s2 + $0x1c] sm:$0xf]
  %v71 = vld [vmem:[%s2 + $0x20] sm:$0xf]
  %v72 = vld [vmem:[%s2 + $0x24] sm:$0xf]
  %v73 = vld [vmem:[%s2 + $0x28] sm:$0xf]
  %v74 = vld [vmem:[%s2 + $0x2c] sm:$0xf]
  %v75 = vld [vmem:[%s2 + $0x30] sm:$0xf]
  %v76 = vld [vmem:[%s2 + $0x34] sm:$0xf]
  %v77 = vld [vmem:[%s2 + $0x38] sm:$0xf]
  %v78 = vld [vmem:[%s2 + $0x3c] sm:$0xf]
  %v87 = vunpack.c.l.b16 %v55
  %v88 = vunpack.c.l.b16 %v56
  %v89 = vunpack.c.l.b16 %v57
  %v90 = vunpack.c.l.b16 %v58
  %v91 = vunpack.c.l.b16 %v59
  %v92 = vunpack.c.l.b16 %v60
  %v93 = vunpack.c.l.b16 %v61
  %v94 = vunpack.c.l.b16 %v62
  %v95 = vpack.c.b16 %v88, %v87
  %v96 = vpack.c.b16 %v90, %v89
  %v97 = vpack.c.b16 %v92, %v91
  %v98 = vpack.c.b16 %v94, %v93
  %v119 = vunpack.c.l.b16 %v63
  %v120 = vunpack.c.l.b16 %v64
  %v121 = vunpack.c.l.b16 %v65
  %v122 = vunpack.c.l.b16 %v66
  %v123 = vunpack.c.l.b16 %v67
  %v124 = vunpack.c.l.b16 %v68
  %v125 = vunpack.c.l.b16 %v69
  %v126 = vunpack.c.l.b16 %v70
  %v127 = vunpack.c.l.b16 %v71
  %v128 = vunpack.c.l.b16 %v72
  %v129 = vunpack.c.l.b16 %v73
  %v130 = vunpack.c.l.b16 %v74
  %v131 = vunpack.c.l.b16 %v75
  %v132 = vunpack.c.l.b16 %v76
  %v133 = vunpack.c.l.b16 %v77
  %v134 = vunpack.c.l.b16 %v78
  %v135 = vpack.c.b16 %v120, %v119
  %v136 = vpack.c.b16 %v122, %v121
  %v137 = vpack.c.b16 %v124, %v123
  %v138 = vpack.c.b16 %v126, %v125
  %v139 = vpack.c.b16 %v128, %v127
  %v140 = vpack.c.b16 %v130, %v129
  %v141 = vpack.c.b16 %v132, %v131
  %v142 = vpack.c.b16 %v134, %v133
  %151 = vmatprep.subr.bf16.mxu0 0
  %152 = vmatpush1.bf16.msra.mxu0 %v135
  %153 = vmatprep.subr.bf16.mxu0 0
  %154 = vmatpush1.bf16.msra.mxu0 %v136
  %155 = vmatprep.subr.bf16.mxu0 0
  %156 = vmatpush1.bf16.msra.mxu0 %v137
  %157 = vmatprep.subr.bf16.mxu0 0
  %158 = vmatpush1.bf16.msra.mxu0 %v138
  %159 = vmatprep.subr.bf16.mxu0 0
  %160 = vmatpush1.bf16.msra.mxu0 %v139
  %161 = vmatprep.subr.bf16.mxu0 0
  %162 = vmatpush1.bf16.msra.mxu0 %v140
  %163 = vmatprep.subr.bf16.mxu0 0
  %164 = vmatpush1.bf16.msra.mxu0 %v141
  %165 = vmatprep.subr.bf16.mxu0 0
  %166 = vmatpush1.bf16.msra.mxu0 %v142
  %167 = vmatprep.subr.bf16.mxu0 0
  %168 = vmatpush1.bf16.msra.mxu0 0
  %169 = vmatprep.subr.bf16.mxu0 0
  %170 = vmatpush1.bf16.msra.mxu0 0
  %171 = vmatprep.subr.bf16.mxu0 0
  %172 = vmatpush1.bf16.msra.mxu0 0
  %173 = vmatprep.subr.bf16.mxu0 0
  %174 = vmatpush1.bf16.msra.mxu0 0
  %175 = vmatprep.subr.bf16.mxu0 0
  %176 = vmatpush1.bf16.msra.mxu0 0
  %177 = vmatprep.subr.bf16.mxu0 0
  %178 = vmatpush1.bf16.msra.mxu0 0
  %179 = vmatprep.subr.bf16.mxu0 0
  %180 = vmatpush1.bf16.msra.mxu0 0
  %181 = vmatprep.subr.bf16.mxu0 0
  %182 = vmatpush1.bf16.msra.mxu0 0
  %183 = vmatprep.mubr.bf16.mxu0 0
  %184 = vmatmul.mubr.bf16.gmra.mrb[0].mxu0 %v95
  %v185 = vpop.f32.mrb[0].mxu0
  %v186 = vadd.f32 0.0, %v185
  %v187 = vpop.f32.mrb[0].mxu0
  %v188 = vpop.f32.mrb[0].mxu0
  %v189 = vadd.f32 0.0, %v188
  %v190 = vpop.f32.mrb[0].mxu0
  %191 = vmatprep.mubr.bf16.mxu0 0
  %192 = vmatmul.mubr.bf16.gmra.mrb[0].mxu0 %v96
  %v193 = vpop.f32.mrb[0].mxu0
  %v194 = vadd.f32 0.0, %v193
  %v195 = vpop.f32.mrb[0].mxu0
  %v196 = vpop.f32.mrb[0].mxu0
  %v197 = vadd.f32 0.0, %v196
  %v198 = vpop.f32.mrb[0].mxu0
  %199 = vmatprep.mubr.bf16.mxu0 0
  %200 = vmatmul.mubr.bf16.gmra.mrb[0].mxu0 %v97
  %v201 = vpop.f32.mrb[0].mxu0
  %v202 = vadd.f32 0.0, %v201
  %v203 = vpop.f32.mrb[0].mxu0
  %v204 = vpop.f32.mrb[0].mxu0
  %v205 = vadd.f32 0.0, %v204
  %v206 = vpop.f32.mrb[0].mxu0
  %207 = vmatprep.mubr.bf16.mxu0 0
  %208 = vmatmul.mubr.bf16.gmra.mrb[0].mxu0 %v98
  %v209 = vpop.f32.mrb[0].mxu0
  %v210 = vadd.f32 0.0, %v209
  %v211 = vpop.f32.mrb[0].mxu0
  %v212 = vpop.f32.mrb[0].mxu0
  %v213 = vadd.f32 0.0, %v212
  %v214 = vpop.f32.mrb[0].mxu0
  %215 = vdwg.mxu0
  %v216 = vadd.f32 %v47, %v186
  %v217 = vadd.f32 %v48, %v189
  %v218 = vadd.f32 %v49, %v194
  %v219 = vadd.f32 %v50, %v197
  %v220 = vadd.f32 %v51, %v202
  %v221 = vadd.f32 %v52, %v205
  %v222 = vadd.f32 %v53, %v210
  %v223 = vadd.f32 %v54, %v213
  %224 = vst [vmem:[#allocation2] sm:$0xff] %v216
  %225 = vst [vmem:[#allocation2 + $0x8] sm:$0xff] %v217
  %226 = vst [vmem:[#allocation2 + $0x10] sm:$0xff] %v218
  %227 = vst [vmem:[#allocation2 + $0x18] sm:$0xff] %v219
  %228 = vst [vmem:[#allocation2 + $0x20] sm:$0xff] %v220
  %229 = vst [vmem:[#allocation2 + $0x28] sm:$0xff] %v221
  %230 = vst [vmem:[#allocation2 + $0x30] sm:$0xff] %v222
  %231 = vst [vmem:[#allocation2 + $0x38] sm:$0xff] %v223
  %v232 = vld [vmem:[#allocation3] sm:$0xff]
  %v233 = vld [vmem:[#allocation3 + $0x8] sm:$0xff]
  %v234 = vld [vmem:[#allocation3 + $0x10] sm:$0xff]
  %v235 = vld [vmem:[#allocation3 + $0x18] sm:$0xff]
  %v236 = vld [vmem:[#allocation3 + $0x20] sm:$0xff]
  %v237 = vld [vmem:[#allocation3 + $0x28] sm:$0xff]
  %v238 = vld [vmem:[#allocation3 + $0x30] sm:$0xff]
  %v239 = vld [vmem:[#allocation3 + $0x38] sm:$0xff]
  %v240 = vld [vmem:[%s1] sm:$0xf]
  %v241 = vld [vmem:[%s1 + $0x4] sm:$0xf]
  %v242 = vld [vmem:[%s1 + $0x8] sm:$0xf]
  %v243 = vld [vmem:[%s1 + $0xc] sm:$0xf]
  %v244 = vld [vmem:[%s1 + $0x10] sm:$0xf]
  %v245 = vld [vmem:[%s1 + $0x14] sm:$0xf]
  %v246 = vld [vmem:[%s1 + $0x18] sm:$0xf]
  %v247 = vld [vmem:[%s1 + $0x1c] sm:$0xf]
  %v248 = vld [vmem:[%s3] sm:$0xf]
  %v249 = vld [vmem:[%s3 + $0x4] sm:$0xf]
  %v250 = vld [vmem:[%s3 + $0x8] sm:$0xf]
  %v251 = vld [vmem:[%s3 + $0xc] sm:$0xf]
  %v252 = vld [vmem:[%s3 + $0x10] sm:$0xf]
  %v253 = vld [vmem:[%s3 + $0x14] sm:$0xf]
  %v254 = vld [vmem:[%s3 + $0x18] sm:$0xf]
  %v255 = vld [vmem:[%s3 + $0x1c] sm:$0xf]
  %v256 = vld [vmem:[%s3 + $0x20] sm:$0xf]
  %v257 = vld [vmem:[%s3 + $0x24] sm:$0xf]
  %v258 = vld [vmem:[%s3 + $0x28] sm:$0xf]
  %v259 = vld [vmem:[%s3 + $0x2c] sm:$0xf]
  %v260 = vld [vmem:[%s3 + $0x30] sm:$0xf]
  %v261 = vld [vmem:[%s3 + $0x34] sm:$0xf]
  %v262 = vld [vmem:[%s3 + $0x38] sm:$0xf]
  %v263 = vld [vmem:[%s3 + $0x3c] sm:$0xf]
  %v272 = vunpack.c.l.b16 %v240
  %v273 = vunpack.c.l.b16 %v241
  %v274 = vunpack.c.l.b16 %v242
  %v275 = vunpack.c.l.b16 %v243
  %v276 = vunpack.c.l.b16 %v244
  %v277 = vunpack.c.l.b16 %v245
  %v278 = vunpack.c.l.b16 %v246
  %v279 = vunpack.c.l.b16 %v247
  %v280 = vpack.c.b16 %v273, %v272
  %v281 = vpack.c.b16 %v275, %v274
  %v282 = vpack.c.b16 %v277, %v276
  %v283 = vpack.c.b16 %v279, %v278
  %v304 = vunpack.c.l.b16 %v248
  %v305 = vunpack.c.l.b16 %v249
  %v306 = vunpack.c.l.b16 %v250
  %v307 = vunpack.c.l.b16 %v251
  %v308 = vunpack.c.l.b16 %v252
  %v309 = vunpack.c.l.b16 %v253
  %v310 = vunpack.c.l.b16 %v254
  %v311 = vunpack.c.l.b16 %v255
  %v312 = vunpack.c.l.b16 %v256
  %v313 = vunpack.c.l.b16 %v257
  %v314 = vunpack.c.l.b16 %v258
  %v315 = vunpack.c.l.b16 %v259
  %v316 = vunpack.c.l.b16 %v260
  %v317 = vunpack.c.l.b16 %v261
  %v318 = vunpack.c.l.b16 %v262
  %v319 = vunpack.c.l.b16 %v263
  %v320 = vpack.c.b16 %v305, %v304
  %v321 = vpack.c.b16 %v307, %v306
  %v322 = vpack.c.b16 %v309, %v308
  %v323 = vpack.c.b16 %v311, %v310
  %v324 = vpack.c.b16 %v313, %v312
  %v325 = vpack.c.b16 %v315, %v314
  %v326 = vpack.c.b16 %v317, %v316
  %v327 = vpack.c.b16 %v319, %v318
  %336 = vmatprep.subr.bf16.mxu0 0
  %337 = vmatpush1.bf16.msra.mxu0 %v320
  %338 = vmatprep.subr.bf16.mxu0 0
  %339 = vmatpush1.bf16.msra.mxu0 %v321
  %340 = vmatprep.subr.bf16.mxu0 0
  %341 = vmatpush1.bf16.msra.mxu0 %v322
  %342 = vmatprep.subr.bf16.mxu0 0
  %343 = vmatpush1.bf16.msra.mxu0 %v323
  %344 = vmatprep.subr.bf16.mxu0 0
  %345 = vmatpush1.bf16.msra.mxu0 %v324
  %346 = vmatprep.subr.bf16.mxu0 0
  %347 = vmatpush1.bf16.msra.mxu0 %v325
  %348 = vmatprep.subr.bf16.mxu0 0
  %349 = vmatpush1.bf16.msra.mxu0 %v326
  %350 = vmatprep.subr.bf16.mxu0 0
  %351 = vmatpush1.bf16.msra.mxu0 %v327
  %352 = vmatprep.subr.bf16.mxu0 0
  %353 = vmatpush1.bf16.msra.mxu0 0
  %354 = vmatprep.subr.bf16.mxu0 0
  %355 = vmatpush1.bf16.msra.mxu0 0
  %356 = vmatprep.subr.bf16.mxu0 0
  %357 = vmatpush1.bf16.msra.mxu0 0
  %358 = vmatprep.subr.bf16.mxu0 0
  %359 = vmatpush1.bf16.msra.mxu0 0
  %360 = vmatprep.subr.bf16.mxu0 0
  %361 = vmatpush1.bf16.msra.mxu0 0
  %362 = vmatprep.subr.bf16.mxu0 0
  %363 = vmatpush1.bf16.msra.mxu0 0
  %364 = vmatprep.subr.bf16.mxu0 0
  %365 = vmatpush1.bf16.msra.mxu0 0
  %366 = vmatprep.subr.bf16.mxu0 0
  %367 = vmatpush1.bf16.msra.mxu0 0
  %368 = vmatprep.mubr.bf16.mxu0 0
  %369 = vmatmul.mubr.bf16.gmra.mrb[0].mxu0 %v280
  %v370 = vpop.f32.mrb[0].mxu0
  %v371 = vadd.f32 0.0, %v370
  %v372 = vpop.f32.mrb[0].mxu0
  %v373 = vpop.f32.mrb[0].mxu0
  %v374 = vadd.f32 0.0, %v373
  %v375 = vpop.f32.mrb[0].mxu0
  %376 = vmatprep.mubr.bf16.mxu0 0
  %377 = vmatmul.mubr.bf16.gmra.mrb[0].mxu0 %v281
  %v378 = vpop.f32.mrb[0].mxu0
  %v379 = vadd.f32 0.0, %v378
  %v380 = vpop.f32.mrb[0].mxu0
  %v381 = vpop.f32.mrb[0].mxu0
  %v382 = vadd.f32 0.0, %v381
  %v383 = vpop.f32.mrb[0].mxu0
  %384 = vmatprep.mubr.bf16.mxu0 0
  %385 = vmatmul.mubr.bf16.gmra.mrb[0].mxu0 %v282
  %v386 = vpop.f32.mrb[0].mxu0
  %v387 = vadd.f32 0.0, %v386
  %v388 = vpop.f32.mrb[0].mxu0
  %v389 = vpop.f32.mrb[0].mxu0
  %v390 = vadd.f32 0.0, %v389
  %v391 = vpop.f32.mrb[0].mxu0
  %392 = vmatprep.mubr.bf16.mxu0 0
  %393 = vmatmul.mubr.bf16.gmra.mrb[0].mxu0 %v283
  %v394 = vpop.f32.mrb[0].mxu0
  %v395 = vadd.f32 0.0, %v394
  %v396 = vpop.f32.mrb[0].mxu0
  %v397 = vpop.f32.mrb[0].mxu0
  %v398 = vadd.f32 0.0, %v397
  %v399 = vpop.f32.mrb[0].mxu0
  %400 = vdwg.mxu0
  %v401 = vadd.f32 %v232, %v371
  %v402 = vadd.f32 %v233, %v374
  %v403 = vadd.f32 %v234, %v379
  %v404 = vadd.f32 %v235, %v382
  %v405 = vadd.f32 %v236, %v387
  %v406 = vadd.f32 %v237, %v390
  %v407 = vadd.f32 %v238, %v395
  %v408 = vadd.f32 %v239, %v398
  %409 = vst [vmem:[#allocation3] sm:$0xff] %v401
  %410 = vst [vmem:[#allocation3 + $0x8] sm:$0xff] %v402
  %411 = vst [vmem:[#allocation3 + $0x10] sm:$0xff] %v403
  %412 = vst [vmem:[#allocation3 + $0x18] sm:$0xff] %v404
  %413 = vst [vmem:[#allocation3 + $0x20] sm:$0xff] %v405
  %414 = vst [vmem:[#allocation3 + $0x28] sm:$0xff] %v406
  %415 = vst [vmem:[#allocation3 + $0x30] sm:$0xff] %v407
  %416 = vst [vmem:[#allocation3 + $0x38] sm:$0xff] %v408
  // Predicated region
  $region34: #{_forward_impl.5} parent=0 // pred_check
    %p417 = pneg %p27
  $region35: #{_forward_impl.5} parent=0 // pred_check_branch
    %419 = sbr.rel (%p417) target = $region37
  $region36: #{_forward_impl.5} parent=0 // pred_region
    %v420 = vld [vmem:[#allocation2] sm:$0xff]
    %v421 = vld [vmem:[#allocation2 + $0x8] sm:$0xff]
    %v422 = vld [vmem:[#allocation2 + $0x10] sm:$0xff]
    %v423 = vld [vmem:[#allocation2 + $0x18] sm:$0xff]
    %v424 = vld [vmem:[#allocation2 + $0x20] sm:$0xff]
    %v425 = vld [vmem:[#allocation2 + $0x28] sm:$0xff]
    %v426 = vld [vmem:[#allocation2 + $0x30] sm:$0xff]
    %v427 = vld [vmem:[#allocation2 + $0x38] sm:$0xff]
    %v428 = vld [vmem:[%s4] sm:$0x1]
    %v430 = vlaneseq
    %v431 = vshrl.u32 %v430, 7
    %v432 = vsub.s32 0, %v431
    %v433 = vrot.slane %v428, %v432
    %v435 = vadd.f32 %v420, %v433
    %v436 = vadd.f32 %v421, %v433
    %v437 = vadd.f32 %v422, %v433
    %v438 = vadd.f32 %v423, %v433
    %v439 = vadd.f32 %v424, %v433
    %v440 = vadd.f32 %v425, %v433
    %v441 = vadd.f32 %v426, %v433
    %v442 = vadd.f32 %v427, %v433
    %v443 = vld [vmem:[#allocation3] sm:$0xff]
    %v444 = vld [vmem:[#allocation3 + $0x8] sm:$0xff]
    %v445 = vld [vmem:[#allocation3 + $0x10] sm:$0xff]
    %v446 = vld [vmem:[#allocation3 + $0x18] sm:$0xff]
    %v447 = vld [vmem:[#allocation3 + $0x20] sm:$0xff]
    %v448 = vld [vmem:[#allocation3 + $0x28] sm:$0xff]
    %v449 = vld [vmem:[#allocation3 + $0x30] sm:$0xff]
    %v450 = vld [vmem:[#allocation3 + $0x38] sm:$0xff]
    %v451 = vld [vmem:[%s5] sm:$0x1]
    %v453 = vlaneseq
    %v454 = vshrl.u32 %v453, 7
    %v455 = vsub.s32 0, %v454
    %v456 = vrot.slane %v451, %v455
    %v458 = vadd.f32 %v443, %v456
    %v459 = vadd.f32 %v444, %v456
    %v460 = vadd.f32 %v445, %v456
    %v461 = vadd.f32 %v446, %v456
    %v462 = vadd.f32 %v447, %v456
    %v463 = vadd.f32 %v448, %v456
    %v464 = vadd.f32 %v449, %v456
    %v465 = vadd.f32 %v450, %v456
    %v466 = vld [vmem:[%s6] sm:$0xf]
    %v467 = vld [vmem:[%s6 + $0x4] sm:$0xf]
    %v468 = vld [vmem:[%s6 + $0x8] sm:$0xf]
    %v469 = vld [vmem:[%s6 + $0xc] sm:$0xf]
    %v470 = vld [vmem:[%s6 + $0x10] sm:$0xf]
    %v471 = vld [vmem:[%s6 + $0x14] sm:$0xf]
    %v472 = vld [vmem:[%s6 + $0x18] sm:$0xf]
    %v473 = vld [vmem:[%s6 + $0x1c] sm:$0xf]
    %v474 = vunpack.c.l.bf16 %v466
    %v475 = vunpack.c.l.bf16 %v467
    %v476 = vunpack.c.l.bf16 %v468
    %v477 = vunpack.c.l.bf16 %v469
    %v478 = vunpack.c.l.bf16 %v470
    %v479 = vunpack.c.l.bf16 %v471
    %v480 = vunpack.c.l.bf16 %v472
    %v481 = vunpack.c.l.bf16 %v473
    %v482 = vrsqrt.pop %v458
    %v483 = vmul.f32 %v458, %v482
    %vm484 = vcmp.eq.f32.partialorder %v458, inf
    %v485 = vsel %vm484, %v458, %v483
    %vm486 = vcmp.eq.f32.partialorder %v458, 0.0
    %v487 = vand.u32 %v458, 2147483648
    %v488 = vsel %vm486, %v487, %v485
    %v489 = vrsqrt.pop %v459
    %v490 = vmul.f32 %v459, %v489
    %vm491 = vcmp.eq.f32.partialorder %v459, inf
    %v492 = vsel %vm491, %v459, %v490
    %vm493 = vcmp.eq.f32.partialorder %v459, 0.0
    %v494 = vand.u32 %v459, 2147483648
    %v495 = vsel %vm493, %v494, %v492
    %v496 = vrsqrt.pop %v460
    %v497 = vmul.f32 %v460, %v496
    %vm498 = vcmp.eq.f32.partialorder %v460, inf
    %v499 = vsel %vm498, %v460, %v497
    %vm500 = vcmp.eq.f32.partialorder %v460, 0.0
    %v501 = vand.u32 %v460, 2147483648
    %v502 = vsel %vm500, %v501, %v499
    %v503 = vrsqrt.pop %v461
    %v504 = vmul.f32 %v461, %v503
    %vm505 = vcmp.eq.f32.partialorder %v461, inf
    %v506 = vsel %vm505, %v461, %v504
    %vm507 = vcmp.eq.f32.partialorder %v461, 0.0
    %v508 = vand.u32 %v461, 2147483648
    %v509 = vsel %vm507, %v508, %v506
    %v510 = vrsqrt.pop %v462
    %v511 = vmul.f32 %v462, %v510
    %vm512 = vcmp.eq.f32.partialorder %v462, inf
    %v513 = vsel %vm512, %v462, %v511
    %vm514 = vcmp.eq.f32.partialorder %v462, 0.0
    %v515 = vand.u32 %v462, 2147483648
    %v516 = vsel %vm514, %v515, %v513
    %v517 = vrsqrt.pop %v463
    %v518 = vmul.f32 %v463, %v517
    %vm519 = vcmp.eq.f32.partialorder %v463, inf
    %v520 = vsel %vm519, %v463, %v518
    %vm521 = vcmp.eq.f32.partialorder %v463, 0.0
    %v522 = vand.u32 %v463, 2147483648
    %v523 = vsel %vm521, %v522, %v520
    %v524 = vrsqrt.pop %v464
    %v525 = vmul.f32 %v464, %v524
    %vm526 = vcmp.eq.f32.partialorder %v464, inf
    %v527 = vsel %vm526, %v464, %v525
    %vm528 = vcmp.eq.f32.partialorder %v464, 0.0
    %v529 = vand.u32 %v464, 2147483648
    %v530 = vsel %vm528, %v529, %v527
    %v531 = vrsqrt.pop %v465
    %v532 = vmul.f32 %v465, %v531
    %vm533 = vcmp.eq.f32.partialorder %v465, inf
    %v534 = vsel %vm533, %v465, %v532
    %vm535 = vcmp.eq.f32.partialorder %v465, 0.0
    %v536 = vand.u32 %v465, 2147483648
    %v537 = vsel %vm535, %v536, %v534
    %v538 = vmul.f32 %v474, %v488
    %v539 = vmul.f32 %v475, %v495
    %v540 = vmul.f32 %v476, %v502
    %v541 = vmul.f32 %v477, %v509
    %v542 = vmul.f32 %v478, %v516
    %v543 = vmul.f32 %v479, %v523
    %v544 = vmul.f32 %v480, %v530
    %v545 = vmul.f32 %v481, %v537
    %v546 = vadd.f32 %v538, %v435
    %v547 = vadd.f32 %v539, %v436
    %v548 = vadd.f32 %v540, %v437
    %v549 = vadd.f32 %v541, %v438
    %v550 = vadd.f32 %v542, %v439
    %v551 = vadd.f32 %v543, %v440
    %v552 = vadd.f32 %v544, %v441
    %v553 = vadd.f32 %v545, %v442
    %554 = vst [vmem:[%s7] sm:$0xff] %v546
    %555 = vst [vmem:[%s7 + $0x8] sm:$0xff] %v547
    %556 = vst [vmem:[%s7 + $0x10] sm:$0xff] %v548
    %557 = vst [vmem:[%s7 + $0x18] sm:$0xff] %v549
    %558 = vst [vmem:[%s7 + $0x20] sm:$0xff] %v550
    %559 = vst [vmem:[%s7 + $0x28] sm:$0xff] %v551
    %560 = vst [vmem:[%s7 + $0x30] sm:$0xff] %v552
    %561 = vst [vmem:[%s7 + $0x38] sm:$0xff] %v553
  $region37: #{_forward_impl.5} parent=0 // pred_fallthru
    _
  // Predicated region
  $region38: #{_forward_impl.5} parent=0 // pred_check
    _
  $region39: #{_forward_impl.5} parent=0 // pred_check_branch
    %563 = sbr.rel (0) target = $region41
  $region40: #{_forward_impl.5} parent=0 // pred_region
    _
  $region41: #{_forward_impl.5} parent=0 // pred_fallthru
    _
  // Predicated region
  $region42: #{_forward_impl.5} parent=0 // pred_check
    _
  $region43: #{_forward_impl.5} parent=0 // pred_check_branch
    %565 = sbr.rel (0) target = $region45
  $region44: #{_forward_impl.5} parent=0 // pred_region
    _
  $region45: #{_forward_impl.5} parent=0 // pred_fallthru
    _

</llo_original>
